<compile_context>
chip_gen: v7x
topology: tpu7x:2x2x1
jax: 0.10.0
libtpu: 0.0.40
codegen_flags: <defaults>
</compile_context>

<pallas_src>
import math
import functools

import jax
import jax.numpy as jnp
from jax import lax
from jax.experimental import pallas as pl
from jax.experimental.pallas import tpu as pltpu


def block_kernel(xpad_ref, wqk_ref, wv_ref, wp_ref, bqk_ref, bv_ref, lnbp_ref,
                 o_ref, *, n_head, q_len, pad):
    Bb, T, E = o_ref.shape
    H = n_head
    HE = H * E
    M = Bb * T

    xp = xpad_ref[...]                                  # (Bb, T+pad, E) f32
    xpb = xp.astype(jnp.bfloat16)

    # Current-time activation. pad % 8 == 0, so this slice is sublane-aligned.
    x_res = xp[:, pad:, :].reshape(M, E)                # f32 residual input
    x_now = xpb[:, pad:, :].reshape(M, E)               # bf16, conv tap q_len-1

    # ---- Q/K causal-conv taps: lane-dense (M, E) @ (E, 2*H*E), f32 acc ----
    qk = jnp.dot(x_now, wqk_ref[q_len - 1], preferred_element_type=jnp.float32)
    for j in range(q_len - 1):
        off = pad - (q_len - 1) + j
        xj = xpb[:, off:off + T, :].reshape(M, E)
        qk = qk + jnp.dot(xj, wqk_ref[j], preferred_element_type=jnp.float32)
    qk = qk + bqk_ref[...]                              # (M, 2HE); q-half pre-scaled

    # ---- Value (Conv1D rf=1): lane-dense (M, E) @ (E, H*E) ----
    v = jnp.dot(x_now, wv_ref[...], preferred_element_type=jnp.float32)
    v = v + bv_ref[...]                                 # (M, HE)

    q3 = qk[:, :HE].reshape(Bb, T, HE)
    k3 = qk[:, HE:].reshape(Bb, T, HE)
    v3 = v.reshape(Bb, T, HE)

    # Causal mask generated in-kernel (no (T, T) DMA).
    row = lax.broadcasted_iota(jnp.int32, (T, T), 0)
    col = lax.broadcasted_iota(jnp.int32, (T, T), 1)
    causal = (row >= col)[None, :, :]

    # ---- per-head attention (one (Bb,T,T) score tensor live at a time) ----
    dn_s = (((2,), (2,)), ((0,), (0,)))   # (Bb,T,E) x (Bb,T,E) -> (Bb,T,T)
    dn_o = (((2,), (1,)), ((0,), (0,)))   # (Bb,T,T) x (Bb,T,E) -> (Bb,T,E)
    att_heads = []
    for h in range(H):
        sl = slice(h * E, (h + 1) * E)
        qh = q3[:, :, sl].astype(jnp.bfloat16)
        kh = k3[:, :, sl].astype(jnp.bfloat16)
        vh = v3[:, :, sl].astype(jnp.bfloat16)
        s = lax.dot_general(qh, kh, dn_s, preferred_element_type=jnp.float32)
        s = jnp.where(causal, s, -1e9)
        s = s - jnp.max(s, axis=-1, keepdims=True)
        p = jnp.exp(s)
        p = p * pl.reciprocal(jnp.sum(p, axis=-1, keepdims=True), approx=True)
        att_heads.append(
            lax.dot_general(p.astype(jnp.bfloat16), vh, dn_o,
                            preferred_element_type=jnp.float32))
    att = jnp.concatenate(att_heads, axis=-1).reshape(M, HE)   # merge_heads

    # ---- output projection: one matmul with K = H*E ----
    lnb = lnbp_ref[...]                                 # (3, E): [bp, g, beta]
    proj = jnp.dot(att.astype(jnp.bfloat16), wp_ref[...],
                   preferred_element_type=jnp.float32)
    acc = x_res + proj + lnb[0:1, :]

    # ---- LayerNorm (OpenAI style: eps inside sqrt) ----
    mu = jnp.mean(acc, axis=-1, keepdims=True)
    var = jnp.mean((acc - mu) ** 2, axis=-1, keepdims=True)
    y = (acc - mu) * lax.rsqrt(var + 1e-5)
    o_ref[...] = (lnb[1:2, :] * y + lnb[2:3, :]).reshape(Bb, T, E)


def pack_block_params(params, *, n_head, n_embd, q_len, scale=True):
    """One-time parameter repacking (call once, reuse across forward calls)."""
    E, H = n_embd, n_head
    HE = H * E
    wqk = params["wqk"].astype(jnp.float32)             # (q_len, E, 2HE)
    bqk = params["bqk"].astype(jnp.float32)             # (2HE,)
    if scale:                                           # fold 1/sqrt(E) into Q
        s = 1.0 / math.sqrt(E)
        wqk = wqk.at[:, :, :HE].multiply(s)
        bqk = bqk.at[:HE].multiply(s)
    return {
        "wqk": wqk.astype(jnp.bfloat16),                         # (q_len, E, 2HE)
        "wv": params["wv"].astype(jnp.bfloat16),                 # (E, HE)
        "wp": params["wp"].astype(jnp.bfloat16),                 # (HE, E)
        "bqk": bqk.reshape(1, 2 * HE),                           # (1, 2HE) f32
        "bv": params["bv"].astype(jnp.float32).reshape(1, HE),   # (1, HE)  f32
        "lnbp": jnp.stack([params["bp"], params["g"], params["b"]],
                          axis=0).astype(jnp.float32),           # (3, E)   f32
    }


@functools.partial(jax.jit,
                   static_argnames=("n_head", "n_embd", "q_len", "b_block",
                                    "single_buffer_weights"))
def block_forward(x, packed, *, n_head, n_embd, q_len, b_block=None,
                  single_buffer_weights=True):
    B, T, E = x.shape
    H = n_head
    HE = H * E
    assert E == n_embd

    if b_block is None:                         # fold batch into M, up to 8/step
        b_block = min(B, 8)
        while B % b_block:
            b_block -= 1
    assert B % b_block == 0

    # Sublane-aligned left pad: residual / last conv tap start on an 8-row
    # boundary (free view in-kernel).
    pad = 0 if q_len <= 1 else ((q_len - 1 + 7) // 8) * 8
    xpad = jnp.pad(x, ((0, 0), (pad, 0), (0, 0)))
    Tp = T + pad

    kernel = functools.partial(block_kernel, n_head=H, q_len=q_len, pad=pad)

    def resident(shape):
        # Grid-invariant operand: single-buffer it (double-buffering a constant
        # block is pure VMEM waste). Fall back if this jax lacks pipeline_mode.
        idx = lambda b: (0,) * len(shape)
        if single_buffer_weights:
            try:
                return pl.BlockSpec(shape, idx, pipeline_mode=pl.Buffered(1))
            except TypeError:
                pass
        return pl.BlockSpec(shape, idx)

    flops_per_b = (2 * q_len * T * E * (2 * HE)     # QK conv taps
                   + 2 * T * E * HE                 # value
                   + H * 4 * T * T * E              # scores + PV
                   + 2 * T * HE * E)                # projection
    bytes_w = 2 * (q_len * E * 2 * HE + E * HE + HE * E)
    bytes_b = 4 * (2 * HE + HE + 3 * E)
    cost = pl.CostEstimate(
        flops=int(B * flops_per_b),
        transcendentals=int(B * H * T * T),
        bytes_accessed=int(4 * B * Tp * E + 4 * B * T * E + bytes_w + bytes_b))

    return pl.pallas_call(
        kernel,
        out_shape=jax.ShapeDtypeStruct((B, T, E), jnp.float32),
        grid=(B // b_block,),
        in_specs=[
            pl.BlockSpec((b_block, Tp, E), lambda b: (b, 0, 0)),   # xpad
            resident((q_len, E, 2 * HE)),                          # wqk taps
            resident((E, HE)),                                     # wv
            resident((HE, E)),                                     # wp
            resident((1, 2 * HE)),                                 # bqk
            resident((1, HE)),                                     # bv
            resident((3, E)),                                      # bp/g/beta
        ],
        out_specs=pl.BlockSpec((b_block, T, E), lambda b: (b, 0, 0)),
        compiler_params=pltpu.CompilerParams(
            dimension_semantics=("parallel",),
            vmem_limit_bytes=64 * 1024 * 1024),
        cost_estimate=cost,
    )(xpad, packed["wqk"], packed["wv"], packed["wp"],
      packed["bqk"], packed["bv"], packed["lnbp"])


# ---------------------------------------------------------------------------
# Pure-JAX f32 reference (mirrors the PyTorch module exactly) for validation.
# ---------------------------------------------------------------------------
def block_reference(x, p, *, n_head, n_embd, q_len, scale=True):
    B, T, E = x.shape
    H = n_head
    v = x @ p["wv"] + p["bv"]
    xpad = jnp.pad(x, ((0, 0), (q_len - 1, 0), (0, 0)))
    qk = jnp.zeros((B, T, 2 * H * E), jnp.float32) + p["bqk"]
    for j in range(q_len):
        qk = qk + xpad[:, j:j + T, :] @ p["wqk"][j]
    q, k = qk[..., :H * E], qk[..., H * E:]
    qh = q.reshape(B, T, H, E).transpose(0, 2, 1, 3)
    kh = k.reshape(B, T, H, E).transpose(0, 2, 3, 1)
    vh = v.reshape(B, T, H, E).transpose(0, 2, 1, 3)
    s = qh @ kh
    if scale:
        s = s / math.sqrt(E)
    mask = jnp.tril(jnp.ones((T, T), jnp.float32))
    s = s * mask + (-1e9) * (1.0 - mask)
    att = jax.nn.softmax(s, axis=-1)
    a = (att @ vh).transpose(0, 2, 1, 3).reshape(B, T, H * E)
    proj = a @ p["wp"] + p["bp"]
    res = x + proj
    mu = res.mean(-1, keepdims=True)
    var = ((res - mu) ** 2).mean(-1, keepdims=True)
    return p["g"] * (res - mu) / jnp.sqrt(var + 1e-5) + p["b"]


def init_params(key, *, n_head, n_embd, q_len):
    E, H = n_embd, n_head
    ks = jax.random.split(key, 8)
    return {
        # nn.Conv1d(E, 2*H*E, q_len) weight, stored per-tap as (q_len, E, 2*H*E)
        "wqk": jax.random.normal(ks[0], (q_len, E, 2 * H * E), jnp.float32) * 0.02,
        "bqk": jax.random.normal(ks[1], (2 * H * E,), jnp.float32) * 0.02,
        # Conv1D(rf=1) value / c_proj
        "wv": jax.random.normal(ks[2], (E, H * E), jnp.float32) * 0.02,
        "bv": jax.random.normal(ks[3], (H * E,), jnp.float32) * 0.02,
        "wp": jax.random.normal(ks[4], (H * E, E), jnp.float32) * 0.02,
        "bp": jax.random.normal(ks[5], (E,), jnp.float32) * 0.02,
        # LayerNorm
        "g": 1.0 + jax.random.normal(ks[6], (E,), jnp.float32) * 0.02,
        "b": jax.random.normal(ks[7], (E,), jnp.float32) * 0.02,
    }


if __name__ == "__main__":
    # Block(n_head=2, win_len=8, n_embd=32, scale=True, q_len=2, sub_len=4)
    B, T, E, H, Q = 2, 8, 32, 2, 2

    key = jax.random.PRNGKey(0)
    kx, kp = jax.random.split(key)
    x = jax.random.normal(kx, (B, T, E), jnp.float32)
    params = init_params(kp, n_head=H, n_embd=E, q_len=Q)
    packed = pack_block_params(params, n_head=H, n_embd=E, q_len=Q, scale=True)

    try:
        out = jax.block_until_ready(
            block_forward(x, packed, n_head=H, n_embd=E, q_len=Q,
                          single_buffer_weights=True))
    except Exception:
        # jax without BlockSpec pipeline_mode / Buffered(1) support at the
        # top-level pipeline: fall back to default (double-buffered) weights.
        out = jax.block_until_ready(
            block_forward(x, packed, n_head=H, n_embd=E, q_len=Q,
                          single_buffer_weights=False))

    ref = block_reference(x, params, n_head=H, n_embd=E, q_len=Q, scale=True)
    assert out.shape == (B, T, E)
    # bf16 MXU operands (+ approx reciprocal) -> compare against f32 reference
    # at a bf16-appropriate tolerance.
    assert jnp.allclose(out, ref, rtol=1e-2, atol=1e-2), (
        f"max abs err {jnp.max(jnp.abs(out - ref))}")

    print("KERNEL_OK")
</pallas_src>

<mosaic_0001>
module attributes {stable_mosaic.version = 11 : i64} {
  func.func @block_kernel(%arg0: i32, %arg1: memref<2x16x32xf32, #tpu.memory_space<vmem>>, %arg2: memref<2x32x128xbf16, #tpu.memory_space<vmem>>, %arg3: memref<32x64xbf16, #tpu.memory_space<vmem>>, %arg4: memref<64x32xbf16, #tpu.memory_space<vmem>>, %arg5: memref<1x128xf32, #tpu.memory_space<vmem>>, %arg6: memref<1x64xf32, #tpu.memory_space<vmem>>, %arg7: memref<3x32xf32, #tpu.memory_space<vmem>>, %arg8: memref<2x8x32xf32, #tpu.memory_space<vmem>>) attributes {dimension_semantics = [#tpu.dimension_semantics<parallel>], iteration_bounds = array<i64: 1>, scalar_prefetch = 0 : i64, scratch_operands = 0 : i64, tpu.core_type = #tpu.core_type<tc>, window_params = [{transform_indices = @transform_0, window_bounds = array<i64: 2, 16, 32>}, {pipeline_mode = #tpu.pipeline_mode<synchronous>, transform_indices = @transform_1, window_bounds = array<i64: 2, 32, 128>}, {pipeline_mode = #tpu.pipeline_mode<synchronous>, transform_indices = @transform_2, window_bounds = array<i64: 32, 64>}, {pipeline_mode = #tpu.pipeline_mode<synchronous>, transform_indices = @transform_3, window_bounds = array<i64: 64, 32>}, {pipeline_mode = #tpu.pipeline_mode<synchronous>, transform_indices = @transform_4, window_bounds = array<i64: 1, 128>}, {pipeline_mode = #tpu.pipeline_mode<synchronous>, transform_indices = @transform_5, window_bounds = array<i64: 1, 64>}, {pipeline_mode = #tpu.pipeline_mode<synchronous>, transform_indices = @transform_6, window_bounds = array<i64: 3, 32>}, {transform_indices = @transform_7, window_bounds = array<i64: 2, 8, 32>}]} {
    %c0 = arith.constant 0 : index
    %c0_0 = arith.constant 0 : index
    %c0_1 = arith.constant 0 : index
    %0 = vector.load %arg1[%c0, %c0_0, %c0_1] : memref<2x16x32xf32, #tpu.memory_space<vmem>>, vector<2x16x32xf32>
    %1 = arith.truncf %0 : vector<2x16x32xf32> to vector<2x16x32xbf16>
    %2 = vector.extract_strided_slice %0 {offsets = [0, 8, 0], sizes = [2, 8, 32], strides = [1, 1, 1]} : vector<2x16x32xf32> to vector<2x8x32xf32>
    %3 = vector.shape_cast %2 : vector<2x8x32xf32> to vector<16x32xf32>
    %4 = vector.extract_strided_slice %1 {offsets = [0, 8, 0], sizes = [2, 8, 32], strides = [1, 1, 1]} : vector<2x16x32xbf16> to vector<2x8x32xbf16>
    %5 = vector.shape_cast %4 : vector<2x8x32xbf16> to vector<16x32xbf16>
    %c1 = arith.constant 1 : index
    %c0_2 = arith.constant 0 : index
    %c0_3 = arith.constant 0 : index
    %6 = vector.load %arg2[%c1, %c0_2, %c0_3] : memref<2x32x128xbf16, #tpu.memory_space<vmem>>, vector<1x32x128xbf16>
    %7 = vector.shape_cast %6 : vector<1x32x128xbf16> to vector<32x128xbf16>
    %cst = arith.constant dense<0.000000e+00> : vector<16x128xf32>
    %8 = tpu.matmul %5, %7, %cst {dimension_numbers = #tpu.dot_dimension_numbers<[1], [0], [0], [1], [0, 0, 1, 1], [], []>} : vector<16x32xbf16>, vector<32x128xbf16>, vector<16x128xf32> -> vector<16x128xf32>
    %9 = vector.extract_strided_slice %1 {offsets = [0, 7, 0], sizes = [2, 8, 32], strides = [1, 1, 1]} : vector<2x16x32xbf16> to vector<2x8x32xbf16>
    %10 = vector.shape_cast %9 : vector<2x8x32xbf16> to vector<16x32xbf16>
    %c0_4 = arith.constant 0 : index
    %c0_5 = arith.constant 0 : index
    %c0_6 = arith.constant 0 : index
    %11 = vector.load %arg2[%c0_4, %c0_5, %c0_6] : memref<2x32x128xbf16, #tpu.memory_space<vmem>>, vector<1x32x128xbf16>
    %12 = vector.shape_cast %11 : vector<1x32x128xbf16> to vector<32x128xbf16>
    %cst_7 = arith.constant dense<0.000000e+00> : vector<16x128xf32>
    %13 = tpu.matmul %10, %12, %cst_7 {dimension_numbers = #tpu.dot_dimension_numbers<[1], [0], [0], [1], [0, 0, 1, 1], [], []>} : vector<16x32xbf16>, vector<32x128xbf16>, vector<16x128xf32> -> vector<16x128xf32>
    %14 = arith.addf %8, %13 : vector<16x128xf32>
    %c0_8 = arith.constant 0 : index
    %c0_9 = arith.constant 0 : index
    %15 = vector.load %arg5[%c0_8, %c0_9] : memref<1x128xf32, #tpu.memory_space<vmem>>, vector<1x128xf32>
    %16 = vector.broadcast %15 : vector<1x128xf32> to vector<16x128xf32>
    %17 = arith.addf %14, %16 : vector<16x128xf32>
    %c0_10 = arith.constant 0 : index
    %c0_11 = arith.constant 0 : index
    %18 = vector.load %arg3[%c0_10, %c0_11] : memref<32x64xbf16, #tpu.memory_space<vmem>>, vector<32x64xbf16>
    %cst_12 = arith.constant dense<0.000000e+00> : vector<16x64xf32>
    %19 = tpu.matmul %5, %18, %cst_12 {dimension_numbers = #tpu.dot_dimension_numbers<[1], [0], [0], [1], [0, 0, 1, 1], [], []>} : vector<16x32xbf16>, vector<32x64xbf16>, vector<16x64xf32> -> vector<16x64xf32>
    %c0_13 = arith.constant 0 : index
    %c0_14 = arith.constant 0 : index
    %20 = vector.load %arg6[%c0_13, %c0_14] : memref<1x64xf32, #tpu.memory_space<vmem>>, vector<1x64xf32>
    %21 = vector.broadcast %20 : vector<1x64xf32> to vector<16x64xf32>
    %22 = arith.addf %19, %21 : vector<16x64xf32>
    %23 = vector.extract_strided_slice %17 {offsets = [0, 0], sizes = [16, 64], strides = [1, 1]} : vector<16x128xf32> to vector<16x64xf32>
    %24 = vector.shape_cast %23 : vector<16x64xf32> to vector<2x8x64xf32>
    %25 = vector.extract_strided_slice %17 {offsets = [0, 64], sizes = [16, 64], strides = [1, 1]} : vector<16x128xf32> to vector<16x64xf32>
    %26 = vector.shape_cast %25 : vector<16x64xf32> to vector<2x8x64xf32>
    %27 = vector.shape_cast %22 : vector<16x64xf32> to vector<2x8x64xf32>
    %28 = tpu.iota {dimensions = array<i32: 0>} : vector<8x8xi32>
    %29 = tpu.iota {dimensions = array<i32: 1>} : vector<8x8xi32>
    %30 = arith.cmpi sge, %28, %29 : vector<8x8xi32>
    %31 = vector.shape_cast %30 : vector<8x8xi1> to vector<1x8x8xi1>
    %32 = vector.extract_strided_slice %24 {offsets = [0, 0, 0], sizes = [2, 8, 32], strides = [1, 1, 1]} : vector<2x8x64xf32> to vector<2x8x32xf32>
    %33 = arith.truncf %32 : vector<2x8x32xf32> to vector<2x8x32xbf16>
    %34 = vector.extract_strided_slice %26 {offsets = [0, 0, 0], sizes = [2, 8, 32], strides = [1, 1, 1]} : vector<2x8x64xf32> to vector<2x8x32xf32>
    %35 = arith.truncf %34 : vector<2x8x32xf32> to vector<2x8x32xbf16>
    %36 = vector.extract_strided_slice %27 {offsets = [0, 0, 0], sizes = [2, 8, 32], strides = [1, 1, 1]} : vector<2x8x64xf32> to vector<2x8x32xf32>
    %37 = arith.truncf %36 : vector<2x8x32xf32> to vector<2x8x32xbf16>
    %cst_15 = arith.constant dense<0.000000e+00> : vector<2x8x8xf32>
    %38 = tpu.matmul %33, %35, %cst_15 {dimension_numbers = #tpu.dot_dimension_numbers<[2], [2], [1], [1], [0, 0, 0, 1, 1, 1], [0], [0]>} : vector<2x8x32xbf16>, vector<2x8x32xbf16>, vector<2x8x8xf32> -> vector<2x8x8xf32>
    %cst_16 = arith.constant -1.000000e+09 : f32
    %39 = vector.shape_cast %31 : vector<1x8x8xi1> to vector<1x8x8xi1>
    %40 = vector.broadcast %39 : vector<1x8x8xi1> to vector<2x8x8xi1>
    %41 = vector.broadcast %cst_16 : f32 to vector<2x8x8xf32>
    %42 = arith.select %40, %38, %41 : vector<2x8x8xi1>, vector<2x8x8xf32>
    %cst_17 = arith.constant dense<0xFF800000> : vector<2x8xf32>
    %43 = vector.multi_reduction <maximumf>, %42, %cst_17 [2] : vector<2x8x8xf32> to vector<2x8xf32>
    %44 = vector.shape_cast %43 : vector<2x8xf32> to vector<2x8x1xf32>
    %45 = vector.broadcast %44 : vector<2x8x1xf32> to vector<2x8x8xf32>
    %46 = arith.subf %42, %45 : vector<2x8x8xf32>
    %47 = math.exp %46 : vector<2x8x8xf32>
    %cst_18 = arith.constant dense<0.000000e+00> : vector<2x8xf32>
    %48 = vector.multi_reduction <add>, %47, %cst_18 [2] : vector<2x8x8xf32> to vector<2x8xf32>
    %49 = vector.shape_cast %48 : vector<2x8xf32> to vector<2x8x1xf32>
    %50 = tpu.reciprocal %49 {approx = true} : vector<2x8x1xf32> -> vector<2x8x1xf32>
    %51 = vector.broadcast %50 : vector<2x8x1xf32> to vector<2x8x8xf32>
    %52 = arith.mulf %47, %51 : vector<2x8x8xf32>
    %53 = arith.truncf %52 : vector<2x8x8xf32> to vector<2x8x8xbf16>
    %cst_19 = arith.constant dense<0.000000e+00> : vector<2x8x32xf32>
    %54 = tpu.matmul %53, %37, %cst_19 {dimension_numbers = #tpu.dot_dimension_numbers<[2], [1], [1], [2], [0, 0, 0, 1, 1, 2], [0], [0]>} : vector<2x8x8xbf16>, vector<2x8x32xbf16>, vector<2x8x32xf32> -> vector<2x8x32xf32>
    %55 = vector.extract_strided_slice %24 {offsets = [0, 0, 32], sizes = [2, 8, 32], strides = [1, 1, 1]} : vector<2x8x64xf32> to vector<2x8x32xf32>
    %56 = arith.truncf %55 : vector<2x8x32xf32> to vector<2x8x32xbf16>
    %57 = vector.extract_strided_slice %26 {offsets = [0, 0, 32], sizes = [2, 8, 32], strides = [1, 1, 1]} : vector<2x8x64xf32> to vector<2x8x32xf32>
    %58 = arith.truncf %57 : vector<2x8x32xf32> to vector<2x8x32xbf16>
    %59 = vector.extract_strided_slice %27 {offsets = [0, 0, 32], sizes = [2, 8, 32], strides = [1, 1, 1]} : vector<2x8x64xf32> to vector<2x8x32xf32>
    %60 = arith.truncf %59 : vector<2x8x32xf32> to vector<2x8x32xbf16>
    %cst_20 = arith.constant dense<0.000000e+00> : vector<2x8x8xf32>
    %61 = tpu.matmul %56, %58, %cst_20 {dimension_numbers = #tpu.dot_dimension_numbers<[2], [2], [1], [1], [0, 0, 0, 1, 1, 1], [0], [0]>} : vector<2x8x32xbf16>, vector<2x8x32xbf16>, vector<2x8x8xf32> -> vector<2x8x8xf32>
    %cst_21 = arith.constant -1.000000e+09 : f32
    %62 = vector.shape_cast %31 : vector<1x8x8xi1> to vector<1x8x8xi1>
    %63 = vector.broadcast %62 : vector<1x8x8xi1> to vector<2x8x8xi1>
    %64 = vector.broadcast %cst_21 : f32 to vector<2x8x8xf32>
    %65 = arith.select %63, %61, %64 : vector<2x8x8xi1>, vector<2x8x8xf32>
    %cst_22 = arith.constant dense<0xFF800000> : vector<2x8xf32>
    %66 = vector.multi_reduction <maximumf>, %65, %cst_22 [2] : vector<2x8x8xf32> to vector<2x8xf32>
    %67 = vector.shape_cast %66 : vector<2x8xf32> to vector<2x8x1xf32>
    %68 = vector.broadcast %67 : vector<2x8x1xf32> to vector<2x8x8xf32>
    %69 = arith.subf %65, %68 : vector<2x8x8xf32>
    %70 = math.exp %69 : vector<2x8x8xf32>
    %cst_23 = arith.constant dense<0.000000e+00> : vector<2x8xf32>
    %71 = vector.multi_reduction <add>, %70, %cst_23 [2] : vector<2x8x8xf32> to vector<2x8xf32>
    %72 = vector.shape_cast %71 : vector<2x8xf32> to vector<2x8x1xf32>
    %73 = tpu.reciprocal %72 {approx = true} : vector<2x8x1xf32> -> vector<2x8x1xf32>
    %74 = vector.broadcast %73 : vector<2x8x1xf32> to vector<2x8x8xf32>
    %75 = arith.mulf %70, %74 : vector<2x8x8xf32>
    %76 = arith.truncf %75 : vector<2x8x8xf32> to vector<2x8x8xbf16>
    %cst_24 = arith.constant dense<0.000000e+00> : vector<2x8x32xf32>
    %77 = tpu.matmul %76, %60, %cst_24 {dimension_numbers = #tpu.dot_dimension_numbers<[2], [1], [1], [2], [0, 0, 0, 1, 1, 2], [0], [0]>} : vector<2x8x8xbf16>, vector<2x8x32xbf16>, vector<2x8x32xf32> -> vector<2x8x32xf32>
    %78 = tpu.concatenate %54, %77 in 2 : vector<2x8x32xf32>, vector<2x8x32xf32> -> vector<2x8x64xf32>
    %79 = vector.shape_cast %78 : vector<2x8x64xf32> to vector<16x64xf32>
    %c0_25 = arith.constant 0 : index
    %c0_26 = arith.constant 0 : index
    %80 = vector.load %arg7[%c0_25, %c0_26] : memref<3x32xf32, #tpu.memory_space<vmem>>, vector<3x32xf32>
    %81 = arith.truncf %79 : vector<16x64xf32> to vector<16x64xbf16>
    %c0_27 = arith.constant 0 : index
    %c0_28 = arith.constant 0 : index
    %82 = vector.load %arg4[%c0_27, %c0_28] : memref<64x32xbf16, #tpu.memory_space<vmem>>, vector<64x32xbf16>
    %cst_29 = arith.constant dense<0.000000e+00> : vector<16x32xf32>
    %83 = tpu.matmul %81, %82, %cst_29 {dimension_numbers = #tpu.dot_dimension_numbers<[1], [0], [0], [1], [0, 0, 1, 1], [], []>} : vector<16x64xbf16>, vector<64x32xbf16>, vector<16x32xf32> -> vector<16x32xf32>
    %84 = arith.addf %3, %83 : vector<16x32xf32>
    %85 = vector.extract_strided_slice %80 {offsets = [0, 0], sizes = [1, 32], strides = [1, 1]} : vector<3x32xf32> to vector<1x32xf32>
    %86 = vector.broadcast %85 : vector<1x32xf32> to vector<16x32xf32>
    %87 = arith.addf %84, %86 : vector<16x32xf32>
    %cst_30 = arith.constant dense<0.000000e+00> : vector<16xf32>
    %88 = vector.multi_reduction <add>, %87, %cst_30 [1] : vector<16x32xf32> to vector<16xf32>
    %89 = vector.shape_cast %88 : vector<16xf32> to vector<16x1xf32>
    %cst_31 = arith.constant 3.200000e+01 : f32
    %90 = vector.broadcast %cst_31 : f32 to vector<16x1xf32>
    %91 = arith.divf %89, %90 : vector<16x1xf32>
    %92 = vector.broadcast %91 : vector<16x1xf32> to vector<16x32xf32>
    %93 = arith.subf %87, %92 : vector<16x32xf32>
    %94 = arith.mulf %93, %93 : vector<16x32xf32>
    %cst_32 = arith.constant dense<0.000000e+00> : vector<16xf32>
    %95 = vector.multi_reduction <add>, %94, %cst_32 [1] : vector<16x32xf32> to vector<16xf32>
    %96 = vector.shape_cast %95 : vector<16xf32> to vector<16x1xf32>
    %cst_33 = arith.constant 3.200000e+01 : f32
    %97 = vector.broadcast %cst_33 : f32 to vector<16x1xf32>
    %98 = arith.divf %96, %97 : vector<16x1xf32>
    %99 = vector.broadcast %91 : vector<16x1xf32> to vector<16x32xf32>
    %100 = arith.subf %87, %99 : vector<16x32xf32>
    %cst_34 = arith.constant 9.99999974E-6 : f32
    %101 = vector.broadcast %cst_34 : f32 to vector<16x1xf32>
    %102 = arith.addf %98, %101 : vector<16x1xf32>
    %103 = math.rsqrt %102 : vector<16x1xf32>
    %104 = vector.broadcast %103 : vector<16x1xf32> to vector<16x32xf32>
    %105 = arith.mulf %100, %104 : vector<16x32xf32>
    %106 = vector.extract_strided_slice %80 {offsets = [1, 0], sizes = [1, 32], strides = [1, 1]} : vector<3x32xf32> to vector<1x32xf32>
    %107 = vector.broadcast %106 : vector<1x32xf32> to vector<16x32xf32>
    %108 = arith.mulf %107, %105 : vector<16x32xf32>
    %109 = vector.extract_strided_slice %80 {offsets = [2, 0], sizes = [1, 32], strides = [1, 1]} : vector<3x32xf32> to vector<1x32xf32>
    %110 = vector.broadcast %109 : vector<1x32xf32> to vector<16x32xf32>
    %111 = arith.addf %108, %110 : vector<16x32xf32>
    %112 = vector.shape_cast %111 : vector<16x32xf32> to vector<2x8x32xf32>
    %c0_35 = arith.constant 0 : index
    %c0_36 = arith.constant 0 : index
    %c0_37 = arith.constant 0 : index
    %113 = vector.load %arg8[%c0_35, %c0_36, %c0_37] : memref<2x8x32xf32, #tpu.memory_space<vmem>>, vector<2x8x32xf32>
    tpu.vector_store %arg8[%c0_35, %c0_36, %c0_37], %112 {strides = array<i32>} : memref<2x8x32xf32, #tpu.memory_space<vmem>>, vector<2x8x32xf32>,
    return
  }
  func.func @transform_0(%arg0: i32) -> (i32, i32, i32) {
    %c0_i32 = arith.constant 0 : i32
    %c0_i32_0 = arith.constant 0 : i32
    %c0_i32_1 = arith.constant 0 : i32
    return %arg0, %c0_i32, %c0_i32_0 : i32, i32, i32
  }
  func.func @transform_1(%arg0: i32) -> (i32, i32, i32) {
    %c0_i32 = arith.constant 0 : i32
    %c0_i32_0 = arith.constant 0 : i32
    %c0_i32_1 = arith.constant 0 : i32
    %c0_i32_2 = arith.constant 0 : i32
    return %c0_i32, %c0_i32_0, %c0_i32_1 : i32, i32, i32
  }
  func.func @transform_2(%arg0: i32) -> (i32, i32) {
    %c0_i32 = arith.constant 0 : i32
    %c0_i32_0 = arith.constant 0 : i32
    %c0_i32_1 = arith.constant 0 : i32
    return %c0_i32, %c0_i32_0 : i32, i32
  }
  func.func @transform_3(%arg0: i32) -> (i32, i32) {
    %c0_i32 = arith.constant 0 : i32
    %c0_i32_0 = arith.constant 0 : i32
    %c0_i32_1 = arith.constant 0 : i32
    return %c0_i32, %c0_i32_0 : i32, i32
  }
  func.func @transform_4(%arg0: i32) -> (i32, i32) {
    %c0_i32 = arith.constant 0 : i32
    %c0_i32_0 = arith.constant 0 : i32
    %c0_i32_1 = arith.constant 0 : i32
    return %c0_i32, %c0_i32_0 : i32, i32
  }
  func.func @transform_5(%arg0: i32) -> (i32, i32) {
    %c0_i32 = arith.constant 0 : i32
    %c0_i32_0 = arith.constant 0 : i32
    %c0_i32_1 = arith.constant 0 : i32
    return %c0_i32, %c0_i32_0 : i32, i32
  }
  func.func @transform_6(%arg0: i32) -> (i32, i32) {
    %c0_i32 = arith.constant 0 : i32
    %c0_i32_0 = arith.constant 0 : i32
    %c0_i32_1 = arith.constant 0 : i32
    return %c0_i32, %c0_i32_0 : i32, i32
  }
  func.func @transform_7(%arg0: i32) -> (i32, i32, i32) {
    %c0_i32 = arith.constant 0 : i32
    %c0_i32_0 = arith.constant 0 : i32
    %c0_i32_1 = arith.constant 0 : i32
    return %arg0, %c0_i32, %c0_i32_0 : i32, i32, i32
  }
}

module attributes {stable_mosaic.version = 11 : i64} {
  func.func @block_kernel(%arg0: i32, %arg1: memref<2x16x32xf32, #tpu.memory_space<vmem>>, %arg2: memref<2x32x128xbf16, #tpu.memory_space<vmem>>, %arg3: memref<32x64xbf16, #tpu.memory_space<vmem>>, %arg4: memref<64x32xbf16, #tpu.memory_space<vmem>>, %arg5: memref<1x128xf32, #tpu.memory_space<vmem>>, %arg6: memref<1x64xf32, #tpu.memory_space<vmem>>, %arg7: memref<3x32xf32, #tpu.memory_space<vmem>>, %arg8: memref<2x8x32xf32, #tpu.memory_space<vmem>>) attributes {dimension_semantics = [#tpu.dimension_semantics<parallel>], iteration_bounds = array<i64: 1>, scalar_prefetch = 0 : i64, scratch_operands = 0 : i64, tpu.core_type = #tpu.core_type<tc>, window_params = [{transform_indices = @transform_0, window_bounds = array<i64: 2, 16, 32>}, {pipeline_mode = #tpu.pipeline_mode<synchronous>, transform_indices = @transform_1, window_bounds = array<i64: 2, 32, 128>}, {pipeline_mode = #tpu.pipeline_mode<synchronous>, transform_indices = @transform_2, window_bounds = array<i64: 32, 64>}, {pipeline_mode = #tpu.pipeline_mode<synchronous>, transform_indices = @transform_3, window_bounds = array<i64: 64, 32>}, {pipeline_mode = #tpu.pipeline_mode<synchronous>, transform_indices = @transform_4, window_bounds = array<i64: 1, 128>}, {pipeline_mode = #tpu.pipeline_mode<synchronous>, transform_indices = @transform_5, window_bounds = array<i64: 1, 64>}, {pipeline_mode = #tpu.pipeline_mode<synchronous>, transform_indices = @transform_6, window_bounds = array<i64: 3, 32>}, {transform_indices = @transform_7, window_bounds = array<i64: 2, 8, 32>}]} {
    %c0 = arith.constant 0 : index
    %c0_0 = arith.constant 0 : index
    %c0_1 = arith.constant 0 : index
    %0 = vector.load %arg1[%c0, %c0_0, %c0_1] : memref<2x16x32xf32, #tpu.memory_space<vmem>>, vector<2x16x32xf32>
    %1 = arith.truncf %0 : vector<2x16x32xf32> to vector<2x16x32xbf16>
    %2 = vector.extract_strided_slice %0 {offsets = [0, 8, 0], sizes = [2, 8, 32], strides = [1, 1, 1]} : vector<2x16x32xf32> to vector<2x8x32xf32>
    %3 = vector.shape_cast %2 : vector<2x8x32xf32> to vector<16x32xf32>
    %4 = vector.extract_strided_slice %1 {offsets = [0, 8, 0], sizes = [2, 8, 32], strides = [1, 1, 1]} : vector<2x16x32xbf16> to vector<2x8x32xbf16>
    %5 = vector.shape_cast %4 : vector<2x8x32xbf16> to vector<16x32xbf16>
    %c1 = arith.constant 1 : index
    %c0_2 = arith.constant 0 : index
    %c0_3 = arith.constant 0 : index
    %6 = vector.load %arg2[%c1, %c0_2, %c0_3] : memref<2x32x128xbf16, #tpu.memory_space<vmem>>, vector<1x32x128xbf16>
    %7 = vector.shape_cast %6 : vector<1x32x128xbf16> to vector<32x128xbf16>
    %cst = arith.constant dense<0.000000e+00> : vector<16x128xf32>
    %8 = tpu.matmul %5, %7, %cst {dimension_numbers = #tpu.dot_dimension_numbers<[1], [0], [0], [1], [0, 0, 1, 1], [], []>} : vector<16x32xbf16>, vector<32x128xbf16>, vector<16x128xf32> -> vector<16x128xf32>
    %9 = vector.extract_strided_slice %1 {offsets = [0, 7, 0], sizes = [2, 8, 32], strides = [1, 1, 1]} : vector<2x16x32xbf16> to vector<2x8x32xbf16>
    %10 = vector.shape_cast %9 : vector<2x8x32xbf16> to vector<16x32xbf16>
    %c0_4 = arith.constant 0 : index
    %c0_5 = arith.constant 0 : index
    %c0_6 = arith.constant 0 : index
    %11 = vector.load %arg2[%c0_4, %c0_5, %c0_6] : memref<2x32x128xbf16, #tpu.memory_space<vmem>>, vector<1x32x128xbf16>
    %12 = vector.shape_cast %11 : vector<1x32x128xbf16> to vector<32x128xbf16>
    %cst_7 = arith.constant dense<0.000000e+00> : vector<16x128xf32>
    %13 = tpu.matmul %10, %12, %cst_7 {dimension_numbers = #tpu.dot_dimension_numbers<[1], [0], [0], [1], [0, 0, 1, 1], [], []>} : vector<16x32xbf16>, vector<32x128xbf16>, vector<16x128xf32> -> vector<16x128xf32>
    %14 = arith.addf %8, %13 : vector<16x128xf32>
    %c0_8 = arith.constant 0 : index
    %c0_9 = arith.constant 0 : index
    %15 = vector.load %arg5[%c0_8, %c0_9] : memref<1x128xf32, #tpu.memory_space<vmem>>, vector<1x128xf32>
    %16 = vector.broadcast %15 : vector<1x128xf32> to vector<16x128xf32>
    %17 = arith.addf %14, %16 : vector<16x128xf32>
    %c0_10 = arith.constant 0 : index
    %c0_11 = arith.constant 0 : index
    %18 = vector.load %arg3[%c0_10, %c0_11] : memref<32x64xbf16, #tpu.memory_space<vmem>>, vector<32x64xbf16>
    %cst_12 = arith.constant dense<0.000000e+00> : vector<16x64xf32>
    %19 = tpu.matmul %5, %18, %cst_12 {dimension_numbers = #tpu.dot_dimension_numbers<[1], [0], [0], [1], [0, 0, 1, 1], [], []>} : vector<16x32xbf16>, vector<32x64xbf16>, vector<16x64xf32> -> vector<16x64xf32>
    %c0_13 = arith.constant 0 : index
    %c0_14 = arith.constant 0 : index
    %20 = vector.load %arg6[%c0_13, %c0_14] : memref<1x64xf32, #tpu.memory_space<vmem>>, vector<1x64xf32>
    %21 = vector.broadcast %20 : vector<1x64xf32> to vector<16x64xf32>
    %22 = arith.addf %19, %21 : vector<16x64xf32>
    %23 = vector.extract_strided_slice %17 {offsets = [0, 0], sizes = [16, 64], strides = [1, 1]} : vector<16x128xf32> to vector<16x64xf32>
    %24 = vector.shape_cast %23 : vector<16x64xf32> to vector<2x8x64xf32>
    %25 = vector.extract_strided_slice %17 {offsets = [0, 64], sizes = [16, 64], strides = [1, 1]} : vector<16x128xf32> to vector<16x64xf32>
    %26 = vector.shape_cast %25 : vector<16x64xf32> to vector<2x8x64xf32>
    %27 = vector.shape_cast %22 : vector<16x64xf32> to vector<2x8x64xf32>
    %28 = tpu.iota {dimensions = array<i32: 0>} : vector<8x8xi32>
    %29 = tpu.iota {dimensions = array<i32: 1>} : vector<8x8xi32>
    %30 = arith.cmpi sge, %28, %29 : vector<8x8xi32>
    %31 = vector.shape_cast %30 : vector<8x8xi1> to vector<1x8x8xi1>
    %32 = vector.extract_strided_slice %24 {offsets = [0, 0, 0], sizes = [2, 8, 32], strides = [1, 1, 1]} : vector<2x8x64xf32> to vector<2x8x32xf32>
    %33 = arith.truncf %32 : vector<2x8x32xf32> to vector<2x8x32xbf16>
    %34 = vector.extract_strided_slice %26 {offsets = [0, 0, 0], sizes = [2, 8, 32], strides = [1, 1, 1]} : vector<2x8x64xf32> to vector<2x8x32xf32>
    %35 = arith.truncf %34 : vector<2x8x32xf32> to vector<2x8x32xbf16>
    %36 = vector.extract_strided_slice %27 {offsets = [0, 0, 0], sizes = [2, 8, 32], strides = [1, 1, 1]} : vector<2x8x64xf32> to vector<2x8x32xf32>
    %37 = arith.truncf %36 : vector<2x8x32xf32> to vector<2x8x32xbf16>
    %cst_15 = arith.constant dense<0.000000e+00> : vector<2x8x8xf32>
    %38 = tpu.matmul %33, %35, %cst_15 {dimension_numbers = #tpu.dot_dimension_numbers<[2], [2], [1], [1], [0, 0, 0, 1, 1, 1], [0], [0]>} : vector<2x8x32xbf16>, vector<2x8x32xbf16>, vector<2x8x8xf32> -> vector<2x8x8xf32>
    %cst_16 = arith.constant -1.000000e+09 : f32
    %39 = vector.shape_cast %31 : vector<1x8x8xi1> to vector<1x8x8xi1>
    %40 = vector.broadcast %39 : vector<1x8x8xi1> to vector<2x8x8xi1>
    %41 = vector.broadcast %cst_16 : f32 to vector<2x8x8xf32>
    %42 = arith.select %40, %38, %41 : vector<2x8x8xi1>, vector<2x8x8xf32>
    %cst_17 = arith.constant dense<0xFF800000> : vector<2x8xf32>
    %43 = vector.multi_reduction <maximumf>, %42, %cst_17 [2] : vector<2x8x8xf32> to vector<2x8xf32>
    %44 = vector.shape_cast %43 : vector<2x8xf32> to vector<2x8x1xf32>
    %45 = vector.broadcast %44 : vector<2x8x1xf32> to vector<2x8x8xf32>
    %46 = arith.subf %42, %45 : vector<2x8x8xf32>
    %47 = math.exp %46 : vector<2x8x8xf32>
    %cst_18 = arith.constant dense<0.000000e+00> : vector<2x8xf32>
    %48 = vector.multi_reduction <add>, %47, %cst_18 [2] : vector<2x8x8xf32> to vector<2x8xf32>
    %49 = vector.shape_cast %48 : vector<2x8xf32> to vector<2x8x1xf32>
    %50 = tpu.reciprocal %49 {approx = true} : vector<2x8x1xf32> -> vector<2x8x1xf32>
    %51 = vector.broadcast %50 : vector<2x8x1xf32> to vector<2x8x8xf32>
    %52 = arith.mulf %47, %51 : vector<2x8x8xf32>
    %53 = arith.truncf %52 : vector<2x8x8xf32> to vector<2x8x8xbf16>
    %cst_19 = arith.constant dense<0.000000e+00> : vector<2x8x32xf32>
    %54 = tpu.matmul %53, %37, %cst_19 {dimension_numbers = #tpu.dot_dimension_numbers<[2], [1], [1], [2], [0, 0, 0, 1, 1, 2], [0], [0]>} : vector<2x8x8xbf16>, vector<2x8x32xbf16>, vector<2x8x32xf32> -> vector<2x8x32xf32>
    %55 = vector.extract_strided_slice %24 {offsets = [0, 0, 32], sizes = [2, 8, 32], strides = [1, 1, 1]} : vector<2x8x64xf32> to vector<2x8x32xf32>
    %56 = arith.truncf %55 : vector<2x8x32xf32> to vector<2x8x32xbf16>
    %57 = vector.extract_strided_slice %26 {offsets = [0, 0, 32], sizes = [2, 8, 32], strides = [1, 1, 1]} : vector<2x8x64xf32> to vector<2x8x32xf32>
    %58 = arith.truncf %57 : vector<2x8x32xf32> to vector<2x8x32xbf16>
    %59 = vector.extract_strided_slice %27 {offsets = [0, 0, 32], sizes = [2, 8, 32], strides = [1, 1, 1]} : vector<2x8x64xf32> to vector<2x8x32xf32>
    %60 = arith.truncf %59 : vector<2x8x32xf32> to vector<2x8x32xbf16>
    %cst_20 = arith.constant dense<0.000000e+00> : vector<2x8x8xf32>
    %61 = tpu.matmul %56, %58, %cst_20 {dimension_numbers = #tpu.dot_dimension_numbers<[2], [2], [1], [1], [0, 0, 0, 1, 1, 1], [0], [0]>} : vector<2x8x32xbf16>, vector<2x8x32xbf16>, vector<2x8x8xf32> -> vector<2x8x8xf32>
    %cst_21 = arith.constant -1.000000e+09 : f32
    %62 = vector.shape_cast %31 : vector<1x8x8xi1> to vector<1x8x8xi1>
    %63 = vector.broadcast %62 : vector<1x8x8xi1> to vector<2x8x8xi1>
    %64 = vector.broadcast %cst_21 : f32 to vector<2x8x8xf32>
    %65 = arith.select %63, %61, %64 : vector<2x8x8xi1>, vector<2x8x8xf32>
    %cst_22 = arith.constant dense<0xFF800000> : vector<2x8xf32>
    %66 = vector.multi_reduction <maximumf>, %65, %cst_22 [2] : vector<2x8x8xf32> to vector<2x8xf32>
    %67 = vector.shape_cast %66 : vector<2x8xf32> to vector<2x8x1xf32>
    %68 = vector.broadcast %67 : vector<2x8x1xf32> to vector<2x8x8xf32>
    %69 = arith.subf %65, %68 : vector<2x8x8xf32>
    %70 = math.exp %69 : vector<2x8x8xf32>
    %cst_23 = arith.constant dense<0.000000e+00> : vector<2x8xf32>
    %71 = vector.multi_reduction <add>, %70, %cst_23 [2] : vector<2x8x8xf32> to vector<2x8xf32>
    %72 = vector.shape_cast %71 : vector<2x8xf32> to vector<2x8x1xf32>
    %73 = tpu.reciprocal %72 {approx = true} : vector<2x8x1xf32> -> vector<2x8x1xf32>
    %74 = vector.broadcast %73 : vector<2x8x1xf32> to vector<2x8x8xf32>
    %75 = arith.mulf %70, %74 : vector<2x8x8xf32>
    %76 = arith.truncf %75 : vector<2x8x8xf32> to vector<2x8x8xbf16>
    %cst_24 = arith.constant dense<0.000000e+00> : vector<2x8x32xf32>
    %77 = tpu.matmul %76, %60, %cst_24 {dimension_numbers = #tpu.dot_dimension_numbers<[2], [1], [1], [2], [0, 0, 0, 1, 1, 2], [0], [0]>} : vector<2x8x8xbf16>, vector<2x8x32xbf16>, vector<2x8x32xf32> -> vector<2x8x32xf32>
    %78 = tpu.concatenate %54, %77 in 2 : vector<2x8x32xf32>, vector<2x8x32xf32> -> vector<2x8x64xf32>
    %79 = vector.shape_cast %78 : vector<2x8x64xf32> to vector<16x64xf32>
    %c0_25 = arith.constant 0 : index
    %c0_26 = arith.constant 0 : index
    %80 = vector.load %arg7[%c0_25, %c0_26] : memref<3x32xf32, #tpu.memory_space<vmem>>, vector<3x32xf32>
    %81 = arith.truncf %79 : vector<16x64xf32> to vector<16x64xbf16>
    %c0_27 = arith.constant 0 : index
    %c0_28 = arith.constant 0 : index
    %82 = vector.load %arg4[%c0_27, %c0_28] : memref<64x32xbf16, #tpu.memory_space<vmem>>, vector<64x32xbf16>
    %cst_29 = arith.constant dense<0.000000e+00> : vector<16x32xf32>
    %83 = tpu.matmul %81, %82, %cst_29 {dimension_numbers = #tpu.dot_dimension_numbers<[1], [0], [0], [1], [0, 0, 1, 1], [], []>} : vector<16x64xbf16>, vector<64x32xbf16>, vector<16x32xf32> -> vector<16x32xf32>
    %84 = arith.addf %3, %83 : vector<16x32xf32>
    %85 = vector.extract_strided_slice %80 {offsets = [0, 0], sizes = [1, 32], strides = [1, 1]} : vector<3x32xf32> to vector<1x32xf32>
    %86 = vector.broadcast %85 : vector<1x32xf32> to vector<16x32xf32>
    %87 = arith.addf %84, %86 : vector<16x32xf32>
    %cst_30 = arith.constant dense<0.000000e+00> : vector<16xf32>
    %88 = vector.multi_reduction <add>, %87, %cst_30 [1] : vector<16x32xf32> to vector<16xf32>
    %89 = vector.shape_cast %88 : vector<16xf32> to vector<16x1xf32>
    %cst_31 = arith.constant 3.200000e+01 : f32
    %90 = vector.broadcast %cst_31 : f32 to vector<16x1xf32>
    %91 = arith.divf %89, %90 : vector<16x1xf32>
    %92 = vector.broadcast %91 : vector<16x1xf32> to vector<16x32xf32>
    %93 = arith.subf %87, %92 : vector<16x32xf32>
    %94 = arith.mulf %93, %93 : vector<16x32xf32>
    %cst_32 = arith.constant dense<0.000000e+00> : vector<16xf32>
    %95 = vector.multi_reduction <add>, %94, %cst_32 [1] : vector<16x32xf32> to vector<16xf32>
    %96 = vector.shape_cast %95 : vector<16xf32> to vector<16x1xf32>
    %cst_33 = arith.constant 3.200000e+01 : f32
    %97 = vector.broadcast %cst_33 : f32 to vector<16x1xf32>
    %98 = arith.divf %96, %97 : vector<16x1xf32>
    %99 = vector.broadcast %91 : vector<16x1xf32> to vector<16x32xf32>
    %100 = arith.subf %87, %99 : vector<16x32xf32>
    %cst_34 = arith.constant 9.99999974E-6 : f32
    %101 = vector.broadcast %cst_34 : f32 to vector<16x1xf32>
    %102 = arith.addf %98, %101 : vector<16x1xf32>
    %103 = math.rsqrt %102 : vector<16x1xf32>
    %104 = vector.broadcast %103 : vector<16x1xf32> to vector<16x32xf32>
    %105 = arith.mulf %100, %104 : vector<16x32xf32>
    %106 = vector.extract_strided_slice %80 {offsets = [1, 0], sizes = [1, 32], strides = [1, 1]} : vector<3x32xf32> to vector<1x32xf32>
    %107 = vector.broadcast %106 : vector<1x32xf32> to vector<16x32xf32>
    %108 = arith.mulf %107, %105 : vector<16x32xf32>
    %109 = vector.extract_strided_slice %80 {offsets = [2, 0], sizes = [1, 32], strides = [1, 1]} : vector<3x32xf32> to vector<1x32xf32>
    %110 = vector.broadcast %109 : vector<1x32xf32> to vector<16x32xf32>
    %111 = arith.addf %108, %110 : vector<16x32xf32>
    %112 = vector.shape_cast %111 : vector<16x32xf32> to vector<2x8x32xf32>
    %c0_35 = arith.constant 0 : index
    %c0_36 = arith.constant 0 : index
    %c0_37 = arith.constant 0 : index
    %113 = vector.load %arg8[%c0_35, %c0_36, %c0_37] : memref<2x8x32xf32, #tpu.memory_space<vmem>>, vector<2x8x32xf32>
    tpu.vector_store %arg8[%c0_35, %c0_36, %c0_37], %112 {strides = array<i32>} : memref<2x8x32xf32, #tpu.memory_space<vmem>>, vector<2x8x32xf32>,
    return
  }
  func.func @transform_0(%arg0: i32) -> (i32, i32, i32) {
    %c0_i32 = arith.constant 0 : i32
    %c0_i32_0 = arith.constant 0 : i32
    %c0_i32_1 = arith.constant 0 : i32
    return %arg0, %c0_i32, %c0_i32_0 : i32, i32, i32
  }
  func.func @transform_1(%arg0: i32) -> (i32, i32, i32) {
    %c0_i32 = arith.constant 0 : i32
    %c0_i32_0 = arith.constant 0 : i32
    %c0_i32_1 = arith.constant 0 : i32
    %c0_i32_2 = arith.constant 0 : i32
    return %c0_i32, %c0_i32_0, %c0_i32_1 : i32, i32, i32
  }
  func.func @transform_2(%arg0: i32) -> (i32, i32) {
    %c0_i32 = arith.constant 0 : i32
    %c0_i32_0 = arith.constant 0 : i32
    %c0_i32_1 = arith.constant 0 : i32
    return %c0_i32, %c0_i32_0 : i32, i32
  }
  func.func @transform_3(%arg0: i32) -> (i32, i32) {
    %c0_i32 = arith.constant 0 : i32
    %c0_i32_0 = arith.constant 0 : i32
    %c0_i32_1 = arith.constant 0 : i32
    return %c0_i32, %c0_i32_0 : i32, i32
  }
  func.func @transform_4(%arg0: i32) -> (i32, i32) {
    %c0_i32 = arith.constant 0 : i32
    %c0_i32_0 = arith.constant 0 : i32
    %c0_i32_1 = arith.constant 0 : i32
    return %c0_i32, %c0_i32_0 : i32, i32
  }
  func.func @transform_5(%arg0: i32) -> (i32, i32) {
    %c0_i32 = arith.constant 0 : i32
    %c0_i32_0 = arith.constant 0 : i32
    %c0_i32_1 = arith.constant 0 : i32
    return %c0_i32, %c0_i32_0 : i32, i32
  }
  func.func @transform_6(%arg0: i32) -> (i32, i32) {
    %c0_i32 = arith.constant 0 : i32
    %c0_i32_0 = arith.constant 0 : i32
    %c0_i32_1 = arith.constant 0 : i32
    return %c0_i32, %c0_i32_0 : i32, i32
  }
  func.func @transform_7(%arg0: i32) -> (i32, i32, i32) {
    %c0_i32 = arith.constant 0 : i32
    %c0_i32_0 = arith.constant 0 : i32
    %c0_i32_1 = arith.constant 0 : i32
    return %arg0, %c0_i32, %c0_i32_0 : i32, i32, i32
  }
}

</mosaic_0001>

<llo_original>
// kernel: block_forward.1
$region0: #{block_forward.1}
  #allocation0 [shape = 'u32[]', space=smem, size = 0x4, offset = 0x4, fixed_abs, tag = 'smem constant byte address 0x4 - core index']
  #allocation1 [shape = 'u32[144,128]{1,0:T(1,128)}', space=vmem, size = 0x12000, scoped, tag = 'internal scratch']
  %s0 = inlined_call_operand.hbm [shape: f32[2,16,32], index: 0, kind: input, shape index: {}]
  %s1 = inlined_call_operand.hbm [shape: bf16[2,32,128], index: 1, kind: input, shape index: {}]
  %s2 = inlined_call_operand.hbm [shape: bf16[32,64], index: 2, kind: input, shape index: {}]
  %s3 = inlined_call_operand.hbm [shape: bf16[64,32], index: 3, kind: input, shape index: {}]
  %s4 = inlined_call_operand.hbm [shape: f32[1,128], index: 4, kind: input, shape index: {}]
  %s5 = inlined_call_operand.hbm [shape: f32[1,64], index: 5, kind: input, shape index: {}]
  %s6 = inlined_call_operand.hbm [shape: f32[3,32], index: 6, kind: input, shape index: {}]
  %s7 = inlined_call_operand.hbm [shape: f32[2,8,32], index: 7, kind: output, shape index: {}]
  %s8 = sld [smem:[#allocation0]]
  $region66: #{block_forward.1} parent=0
    _
  %s10 = ssub.s32 1, %s8
  %s11 = scalar_select 0, %s10, %s8
  $region1: #{block_forward.1} parent=0
    #allocation2 [shape = 'u8[16384]{0}', space=vmem, size = 0x4000, scoped, tag = 'input window, operand 0, single buffered']
    #allocation3 [shape = 's32[1]{0}', space=sflag, size = 0x4, scoped, tag = 'scoped memory for block_forward.1']
    #allocation4 [shape = 's32[1]{0}', space=sflag, size = 0x4, scoped, tag = 'scoped memory for block_forward.1']
    #allocation5 [shape = 'u8[16384]{0}', space=vmem, size = 0x4000, scoped, tag = 'input window, operand 1, single buffered']
    #allocation6 [shape = 's32[1]{0}', space=sflag, size = 0x4, scoped, tag = 'scoped memory for block_forward.1']
    #allocation7 [shape = 'u8[8192]{0}', space=vmem, size = 0x2000, scoped, tag = 'input window, operand 2, single buffered']
    #allocation8 [shape = 'u8[16384]{0}', space=vmem, size = 0x4000, scoped, tag = 'input window, operand 3, single buffered']
    #allocation9 [shape = 's32[1]{0}', space=sflag, size = 0x4, scoped, tag = 'scoped memory for block_forward.1']
    #allocation10 [shape = 'u8[512]{0}', space=vmem, size = 0x400, scoped, tag = 'input window, operand 4, single buffered']
    #allocation11 [shape = 'u8[512]{0}', space=vmem, size = 0x400, scoped, tag = 'input window, operand 5, single buffered']
    #allocation12 [shape = 's32[1]{0}', space=sflag, size = 0x4, scoped, tag = 'scoped memory for block_forward.1']
    #allocation13 [shape = 'u8[2048]{0}', space=vmem, size = 0x800, scoped, tag = 'input window, operand 6, single buffered']
    #allocation14 [shape = 'u8[8192]{0}', space=vmem, size = 0x2000, scoped, tag = 'output window, operand 0, single buffered']
    %12 = vsyncpa [#allocation3], 0
    %13 = vsyncpa [#allocation6], 0
    %14 = vsyncpa [#allocation9], 0
    %15 = vsyncpa [#allocation12], 0
    %16 = vsyncpa [#allocation4], 0
    // Predicated region
    $region2: #{block_forward.1} parent=1 // pred_check
      _
    $region3: #{block_forward.1} parent=1 // pred_check_branch
      %18 = sbr.rel (0) target = $region5
    $region4: #{block_forward.1} parent=1 // pred_region
      %s20 = ssub.s32 512, 512
      %21 = vsyncadd [#allocation3], %s20
      %s22 = sshll.u32 [#allocation2], 4
      %s23 = int_to_ptr.vmem [resolvable:$true] %s22
      %28 = dma.hbm_to_vmem [thread:$0]  %s0, 512, %s23, [#allocation3], 128, 128, 8
    $region5: #{block_forward.1} parent=1 // pred_fallthru
      _
    // Predicated region
    $region6: #{block_forward.1} parent=1 // pred_check
      _
    $region7: #{block_forward.1} parent=1 // pred_check_branch
      %30 = sbr.rel (0) target = $region9
    $region8: #{block_forward.1} parent=1 // pred_region
      %s32 = ssub.s32 512, 512
      %33 = vsyncadd [#allocation6], %s32
      %s34 = sshll.u32 [#allocation5], 4
      %s35 = int_to_ptr.vmem [resolvable:$true] %s34
      %40 = dma.hbm_to_vmem [thread:$0]  %s1, 512, %s35, [#allocation6], 64, 64, 4
    $region9: #{block_forward.1} parent=1 // pred_fallthru
      _
    // Predicated region
    $region10: #{block_forward.1} parent=1 // pred_check
      _
    $region11: #{block_forward.1} parent=1 // pred_check_branch
      %42 = sbr.rel (0) target = $region13
    $region12: #{block_forward.1} parent=1 // pred_region
      %s44 = ssub.s32 256, 256
      %45 = vsyncadd [#allocation6], %s44
      %s46 = sshll.u32 [#allocation7], 4
      %s47 = int_to_ptr.vmem [resolvable:$true] %s46
      %52 = dma.hbm_to_vmem [thread:$0]  %s2, 256, %s47, [#allocation6], 64, 64, 4
    $region13: #{block_forward.1} parent=1 // pred_fallthru
      _
    // Predicated region
    $region14: #{block_forward.1} parent=1 // pred_check
      _
    $region15: #{block_forward.1} parent=1 // pred_check_branch
      %54 = sbr.rel (0) target = $region17
    $region16: #{block_forward.1} parent=1 // pred_region
      %s56 = ssub.s32 512, 512
      %57 = vsyncadd [#allocation9], %s56
      %s58 = sshll.u32 [#allocation8], 4
      %s59 = int_to_ptr.vmem [resolvable:$true] %s58
      %64 = dma.hbm_to_vmem [thread:$0]  %s3, 512, %s59, [#allocation9], 64, 64, 4
    $region17: #{block_forward.1} parent=1 // pred_fallthru
      _
    // Predicated region
    $region18: #{block_forward.1} parent=1 // pred_check
      _
    $region19: #{block_forward.1} parent=1 // pred_check_branch
      %66 = sbr.rel (0) target = $region21
    $region20: #{block_forward.1} parent=1 // pred_region
      %s68 = ssub.s32 16, 16
      %69 = vsyncadd [#allocation9], %s68
      %s71 = sshll.u32 [#allocation10], 4
      %s72 = int_to_ptr.vmem [resolvable:$true] %s71
      %74 = dma.hbm_to_vmem [thread:$0]  %s4, 16, %s72, [#allocation9]
    $region21: #{block_forward.1} parent=1 // pred_fallthru
      _
    // Predicated region
    $region22: #{block_forward.1} parent=1 // pred_check
      _
    $region23: #{block_forward.1} parent=1 // pred_check_branch
      %76 = sbr.rel (0) target = $region25
    $region24: #{block_forward.1} parent=1 // pred_region
      %s78 = ssub.s32 16, 16
      %79 = vsyncadd [#allocation12], %s78
      %s81 = sshll.u32 [#allocation11], 4
      %s82 = int_to_ptr.vmem [resolvable:$true] %s81
      %84 = dma.hbm_to_vmem [thread:$0]  %s5, 16, %s82, [#allocation12]
    $region25: #{block_forward.1} parent=1 // pred_fallthru
      _
    // Predicated region
    $region26: #{block_forward.1} parent=1 // pred_check
      _
    $region27: #{block_forward.1} parent=1 // pred_check_branch
      %86 = sbr.rel (0) target = $region29
    $region28: #{block_forward.1} parent=1 // pred_region
      %s88 = ssub.s32 64, 64
      %89 = vsyncadd [#allocation12], %s88
      %s91 = sshll.u32 [#allocation13], 4
      %s92 = int_to_ptr.vmem [resolvable:$true] %s91
      %94 = dma.hbm_to_vmem [thread:$0]  %s6, 64, %s92, [#allocation12]
    $region29: #{block_forward.1} parent=1 // pred_fallthru
      _
    // Predicated region
    $region30: #{block_forward.1} parent=1 // pred_check
      _
    $region31: #{block_forward.1} parent=1 // pred_check_branch
      %96 = sbr.rel (0) target = $region33
    $region32: #{block_forward.1} parent=1 // pred_region
      %97 = dma.done [#allocation3], 512
    $region33: #{block_forward.1} parent=1 // pred_fallthru
      _
    // Predicated region
    $region34: #{block_forward.1} parent=1 // pred_check
      _
    $region35: #{block_forward.1} parent=1 // pred_check_branch
      %99 = sbr.rel (0) target = $region37
    $region36: #{block_forward.1} parent=1 // pred_region
      %100 = dma.done [#allocation6], 512
    $region37: #{block_forward.1} parent=1 // pred_fallthru
      _
    // Predicated region
    $region38: #{block_forward.1} parent=1 // pred_check
      _
    $region39: #{block_forward.1} parent=1 // pred_check_branch
      %102 = sbr.rel (0) target = $region41
    $region40: #{block_forward.1} parent=1 // pred_region
      %103 = dma.done [#allocation6], 256
    $region41: #{block_forward.1} parent=1 // pred_fallthru
      _
    // Predicated region
    $region42: #{block_forward.1} parent=1 // pred_check
      _
    $region43: #{block_forward.1} parent=1 // pred_check_branch
      %105 = sbr.rel (0) target = $region45
    $region44: #{block_forward.1} parent=1 // pred_region
      %106 = dma.done [#allocation9], 512
    $region45: #{block_forward.1} parent=1 // pred_fallthru
      _
    // Predicated region
    $region46: #{block_forward.1} parent=1 // pred_check
      _
    $region47: #{block_forward.1} parent=1 // pred_check_branch
      %108 = sbr.rel (0) target = $region49
    $region48: #{block_forward.1} parent=1 // pred_region
      %109 = dma.done [#allocation9], 16
    $region49: #{block_forward.1} parent=1 // pred_fallthru
      _
    // Predicated region
    $region50: #{block_forward.1} parent=1 // pred_check
      _
    $region51: #{block_forward.1} parent=1 // pred_check_branch
      %111 = sbr.rel (0) target = $region53
    $region52: #{block_forward.1} parent=1 // pred_region
      %112 = dma.done [#allocation12], 16
    $region53: #{block_forward.1} parent=1 // pred_fallthru
      _
    // Predicated region
    $region54: #{block_forward.1} parent=1 // pred_check
      _
    $region55: #{block_forward.1} parent=1 // pred_check_branch
      %114 = sbr.rel (0) target = $region57
    $region56: #{block_forward.1} parent=1 // pred_region
      %115 = dma.done [#allocation12], 64
    $region57: #{block_forward.1} parent=1 // pred_fallthru
      _
    %v117 = vld [vmem:[#allocation2] sm:$0xff]
    %v118 = vld [vmem:[#allocation2 + $0x8] sm:$0xff]
    %v119 = vld [vmem:[#allocation2 + $0x10] sm:$0xff]
    %v120 = vld [vmem:[#allocation2 + $0x18] sm:$0xff]
    %v121 = vpack.c.bf16 %v118, %v117
    %v122 = vpack.c.bf16 %v120, %v119
    %v125 = vunpack.c.h.b16 %v121
    %v126 = vunpack.c.h.b16 %v122
    %s127 = scalar_lea.vmem [#allocation5], 16
    %v128 = vld [vmem:[%s127] sm:$0xf]
    %v129 = vld [vmem:[%s127 + $0x4] sm:$0xf]
    %v130 = vld [vmem:[%s127 + $0x8] sm:$0xf]
    %v131 = vld [vmem:[%s127 + $0xc] sm:$0xf]
    %v132 = vunpack.c.l.b16 %v121
    %v133 = vunpack.c.l.b16 %v122
    %v134 = vpack.c.b16 %v132, %v132
    %v135 = vpack.c.b16 %v125, %v125
    %v136 = vpack.c.b16 %v133, %v133
    %v137 = vpack.c.b16 %v126, %v126
    %vm138 = vsmask.f32 256
    %vm139 = vsmask.f32 4368
    %vm140 = vmor %vm138, %vm139
    %v142 = vshrl.u32 %v134, 16
    %v144 = vrot.slane %v142, 7
    %v145 = vrot.slane %v144, 4
    %v147 = vshrl.u32 %v135, 16
    %v149 = vrot.slane %v147, 7
    %v150 = vshll.u32 %v135, 16
    %v152 = vor.u32 %v149, %v150
    %v153 = vsel %vm140, %v145, %v152
    %v155 = vshrl.u32 %v136, 16
    %v157 = vrot.slane %v155, 7
    %v158 = vrot.slane %v157, 4
    %v160 = vshrl.u32 %v137, 16
    %v162 = vrot.slane %v160, 7
    %v163 = vshll.u32 %v137, 16
    %v165 = vor.u32 %v162, %v163
    %v166 = vsel %vm140, %v158, %v165
    %v167 = vld [vmem:[#allocation5] sm:$0xf]
    %v168 = vld [vmem:[#allocation5 + $0x4] sm:$0xf]
    %v169 = vld [vmem:[#allocation5 + $0x8] sm:$0xf]
    %v170 = vld [vmem:[#allocation5 + $0xc] sm:$0xf]
    %v171 = vunpack.c.l.b16 %v153
    %v172 = vunpack.c.l.b16 %v166
    %v173 = vpack.c.b16 %v172, %v171
    %v178 = vunpack.c.l.b16 %v167
    %v179 = vunpack.c.l.b16 %v168
    %v180 = vunpack.c.l.b16 %v169
    %v181 = vunpack.c.l.b16 %v170
    %v182 = vpack.c.b16 %v179, %v178
    %v183 = vpack.c.b16 %v181, %v180
    %vm186 = vcmask 261120
    %v188 = vsel %vm186, %v173, 0
    %190 = vmatprep.subr.bf16.mxu0 0
    %191 = vmatpush1.bf16.msra.mxu0 %v182
    %192 = vmatprep.subr.bf16.mxu0 0
    %193 = vmatpush1.bf16.msra.mxu0 %v183
    %194 = vmatprep.subr.bf16.mxu0 0
    %195 = vmatpush1.bf16.msra.mxu0 0
    %196 = vmatprep.subr.bf16.mxu0 0
    %197 = vmatpush1.bf16.msra.mxu0 0
    %198 = vmatprep.subr.bf16.mxu0 0
    %199 = vmatpush1.bf16.msra.mxu0 0
    %200 = vmatprep.subr.bf16.mxu0 0
    %201 = vmatpush1.bf16.msra.mxu0 0
    %202 = vmatprep.subr.bf16.mxu0 0
    %203 = vmatpush1.bf16.msra.mxu0 0
    %204 = vmatprep.subr.bf16.mxu0 0
    %205 = vmatpush1.bf16.msra.mxu0 0
    %206 = vmatprep.subr.bf16.mxu0 0
    %207 = vmatpush1.bf16.msra.mxu0 0
    %208 = vmatprep.subr.bf16.mxu0 0
    %209 = vmatpush1.bf16.msra.mxu0 0
    %210 = vmatprep.subr.bf16.mxu0 0
    %211 = vmatpush1.bf16.msra.mxu0 0
    %212 = vmatprep.subr.bf16.mxu0 0
    %213 = vmatpush1.bf16.msra.mxu0 0
    %214 = vmatprep.subr.bf16.mxu0 0
    %215 = vmatpush1.bf16.msra.mxu0 0
    %216 = vmatprep.subr.bf16.mxu0 0
    %217 = vmatpush1.bf16.msra.mxu0 0
    %218 = vmatprep.subr.bf16.mxu0 0
    %219 = vmatpush1.bf16.msra.mxu0 0
    %220 = vmatprep.subr.bf16.mxu0 0
    %221 = vmatpush1.bf16.msra.mxu0 0
    %222 = vmatprep.mubr.bf16.mxu0 0
    %223 = vmatmul.mubr.bf16.gmra.mrb[0].mxu0 %v188
    %v224 = vpop.f32.mrb[0].mxu0
    %v225 = vadd.f32 0.0, %v224
    %v226 = vpop.f32.mrb[0].mxu0
    %v227 = vpop.f32.mrb[0].mxu0
    %v228 = vadd.f32 0.0, %v227
    %v229 = vpop.f32.mrb[0].mxu0
    %230 = vdwg.mxu0
    %v231 = vpack.c.b16 %v126, %v125
    %v236 = vunpack.c.l.b16 %v128
    %v237 = vunpack.c.l.b16 %v129
    %v238 = vunpack.c.l.b16 %v130
    %v239 = vunpack.c.l.b16 %v131
    %v240 = vpack.c.b16 %v237, %v236
    %v241 = vpack.c.b16 %v239, %v238
    %v245 = vsel %vm186, %v231, 0
    %247 = vmatprep.subr.bf16.mxu0 0
    %248 = vmatpush1.bf16.msra.mxu0 %v240
    %249 = vmatprep.subr.bf16.mxu0 0
    %250 = vmatpush1.bf16.msra.mxu0 %v241
    %251 = vmatprep.subr.bf16.mxu0 0
    %252 = vmatpush1.bf16.msra.mxu0 0
    %253 = vmatprep.subr.bf16.mxu0 0
    %254 = vmatpush1.bf16.msra.mxu0 0
    %255 = vmatprep.subr.bf16.mxu0 0
    %256 = vmatpush1.bf16.msra.mxu0 0
    %257 = vmatprep.subr.bf16.mxu0 0
    %258 = vmatpush1.bf16.msra.mxu0 0
    %259 = vmatprep.subr.bf16.mxu0 0
    %260 = vmatpush1.bf16.msra.mxu0 0
    %261 = vmatprep.subr.bf16.mxu0 0
    %262 = vmatpush1.bf16.msra.mxu0 0
    %263 = vmatprep.subr.bf16.mxu0 0
    %264 = vmatpush1.bf16.msra.mxu0 0
    %265 = vmatprep.subr.bf16.mxu0 0
    %266 = vmatpush1.bf16.msra.mxu0 0
    %267 = vmatprep.subr.bf16.mxu0 0
    %268 = vmatpush1.bf16.msra.mxu0 0
    %269 = vmatprep.subr.bf16.mxu0 0
    %270 = vmatpush1.bf16.msra.mxu0 0
    %271 = vmatprep.subr.bf16.mxu0 0
    %272 = vmatpush1.bf16.msra.mxu0 0
    %273 = vmatprep.subr.bf16.mxu0 0
    %274 = vmatpush1.bf16.msra.mxu0 0
    %275 = vmatprep.subr.bf16.mxu0 0
    %276 = vmatpush1.bf16.msra.mxu0 0
    %277 = vmatprep.subr.bf16.mxu0 0
    %278 = vmatpush1.bf16.msra.mxu0 0
    %279 = vmatprep.mubr.bf16.mxu0 0
    %280 = vmatmul.mubr.bf16.gmra.mrb[0].mxu0 %v245
    %v281 = vpop.f32.mrb[0].mxu0
    %v282 = vadd.f32 %v225, %v281
    %v283 = vpop.f32.mrb[0].mxu0
    %v284 = vpop.f32.mrb[0].mxu0
    %v285 = vadd.f32 %v228, %v284
    %v286 = vpop.f32.mrb[0].mxu0
    %287 = vdwg.mxu0
    %v288 = vld [vmem:[#allocation10] sm:$0x1]
    %v290 = vlaneseq
    %v291 = vshrl.u32 %v290, 7
    %v292 = vsub.s32 0, %v291
    %v293 = vrot.slane %v288, %v292
    %v295 = vadd.f32 %v282, %v293
    %v296 = vadd.f32 %v285, %v293
    %v297 = vld [vmem:[#allocation7] sm:$0xf]
    %v298 = vld [vmem:[#allocation7 + $0x4] sm:$0xf]
    %v299 = vld [vmem:[#allocation7 + $0x8] sm:$0xf]
    %v300 = vld [vmem:[#allocation7 + $0xc] sm:$0xf]
    %v301 = vld [vmem:[#allocation11] sm:$0x1]
    %v303 = vlaneseq
    %v304 = vshrl.u32 %v303, 7
    %v305 = vsub.s32 0, %v304
    %v306 = vrot.slane %v301, %v305
    %v312 = vunpack.c.l.b16 %v297
    %v313 = vunpack.c.l.b16 %v298
    %v314 = vunpack.c.l.b16 %v299
    %v315 = vunpack.c.l.b16 %v300
    %v316 = vpack.c.b16 %v313, %v312
    %v317 = vpack.c.b16 %v315, %v314
    %320 = vmatprep.subr.bf16.mxu0 0
    %321 = vmatpush1.bf16.msra.mxu0 %v316
    %322 = vmatprep.subr.bf16.mxu0 0
    %323 = vmatpush1.bf16.msra.mxu0 %v317
    %324 = vmatprep.subr.bf16.mxu0 0
    %325 = vmatpush1.bf16.msra.mxu0 0
    %326 = vmatprep.subr.bf16.mxu0 0
    %327 = vmatpush1.bf16.msra.mxu0 0
    %328 = vmatprep.subr.bf16.mxu0 0
    %329 = vmatpush1.bf16.msra.mxu0 0
    %330 = vmatprep.subr.bf16.mxu0 0
    %331 = vmatpush1.bf16.msra.mxu0 0
    %332 = vmatprep.subr.bf16.mxu0 0
    %333 = vmatpush1.bf16.msra.mxu0 0
    %334 = vmatprep.subr.bf16.mxu0 0
    %335 = vmatpush1.bf16.msra.mxu0 0
    %336 = vmatprep.subr.bf16.mxu0 0
    %337 = vmatpush1.bf16.msra.mxu0 0
    %338 = vmatprep.subr.bf16.mxu0 0
    %339 = vmatpush1.bf16.msra.mxu0 0
    %340 = vmatprep.subr.bf16.mxu0 0
    %341 = vmatpush1.bf16.msra.mxu0 0
    %342 = vmatprep.subr.bf16.mxu0 0
    %343 = vmatpush1.bf16.msra.mxu0 0
    %344 = vmatprep.subr.bf16.mxu0 0
    %345 = vmatpush1.bf16.msra.mxu0 0
    %346 = vmatprep.subr.bf16.mxu0 0
    %347 = vmatpush1.bf16.msra.mxu0 0
    %348 = vmatprep.subr.bf16.mxu0 0
    %349 = vmatpush1.bf16.msra.mxu0 0
    %350 = vmatprep.subr.bf16.mxu0 0
    %351 = vmatpush1.bf16.msra.mxu0 0
    %352 = vmatprep.mubr.bf16.mxu0 0
    %353 = vmatmul.mubr.bf16.gmra.mrb[0].mxu0 %v245
    %v354 = vpop.f32.mrb[0].mxu0
    %v355 = vadd.f32 %v306, %v354
    %v356 = vpop.f32.mrb[0].mxu0
    %v357 = vpop.f32.mrb[0].mxu0
    %v358 = vadd.f32 %v306, %v357
    %v359 = vpop.f32.mrb[0].mxu0
    %360 = vdwg.mxu0
    %v361 = vlaneseq
    %v362 = vshrl.u32 %v361, 7
    %v363 = vlaneseq
    %v364 = vand.u32 %v363, 127
    %vm365 = vcmp.ge.s32.totalorder %v362, %v364
    %v366 = vpack.c.bf16 %v295, %v295
    %v367 = vpack.c.bf16 %v296, %v296
    %v368 = vpack.c.bf16 %v355, %v355
    %v369 = vpack.c.bf16 %v358, %v358
    %371 = vrot.lane.b32.xlu0 %v366, 64
    %v372 = vpop.permute.xlu0 %371
    %v374 = vsel %vm186, %v366, 0
    %v377 = vsel %vm186, %v372, 0
    %379 = vmatprep.subr.bf16.mxu0 0
    %380 = vmatpush1.bf16.xpose.msra.mxu0 %v377
    %381 = vmatprep.subr.bf16.mxu0 0
    %382 = vmatpush1.bf16.xpose.msra.mxu0 0
    %383 = vmatprep.subr.bf16.mxu0 0
    %384 = vmatpush1.bf16.xpose.msra.mxu0 0
    %385 = vmatprep.subr.bf16.mxu0 0
    %386 = vmatpush1.bf16.xpose.msra.mxu0 0
    %387 = vmatprep.subr.bf16.mxu0 0
    %388 = vmatpush1.bf16.xpose.msra.mxu0 0
    %389 = vmatprep.subr.bf16.mxu0 0
    %390 = vmatpush1.bf16.xpose.msra.mxu0 0
    %391 = vmatprep.subr.bf16.mxu0 0
    %392 = vmatpush1.bf16.xpose.msra.mxu0 0
    %393 = vmatprep.subr.bf16.mxu0 0
    %394 = vmatpush1.bf16.xpose.msra.mxu0 0
    %395 = vmatprep.subr.bf16.mxu0 0
    %396 = vmatpush1.bf16.xpose.msra.mxu0 0
    %397 = vmatprep.subr.bf16.mxu0 0
    %398 = vmatpush1.bf16.xpose.msra.mxu0 0
    %399 = vmatprep.subr.bf16.mxu0 0
    %400 = vmatpush1.bf16.xpose.msra.mxu0 0
    %401 = vmatprep.subr.bf16.mxu0 0
    %402 = vmatpush1.bf16.xpose.msra.mxu0 0
    %403 = vmatprep.subr.bf16.mxu0 0
    %404 = vmatpush1.bf16.xpose.msra.mxu0 0
    %405 = vmatprep.subr.bf16.mxu0 0
    %406 = vmatpush1.bf16.xpose.msra.mxu0 0
    %407 = vmatprep.subr.bf16.mxu0 0
    %408 = vmatpush1.bf16.xpose.msra.mxu0 0
    %409 = vmatprep.subr.bf16.mxu0 0
    %410 = vmatpush1.bf16.xpose.msra.mxu0 0
    %411 = vmatprep.mubr.bf16.mxu0 0
    %412 = vmatmul.mubr.bf16.gmra.mrb[0].mxu0 %v374
    %v413 = vpop.f32.mrb[0].mxu0
    %v414 = vadd.f32 0.0, %v413
    %v415 = vpop.f32.mrb[0].mxu0
    %v416 = vpop.f32.mrb[0].mxu0
    %v417 = vpop.f32.mrb[0].mxu0
    %418 = vdwg.mxu0
    %420 = vrot.lane.b32.xlu0 %v367, 64
    %v421 = vpop.permute.xlu0 %420
    %v423 = vsel %vm186, %v367, 0
    %v426 = vsel %vm186, %v421, 0
    %428 = vmatprep.subr.bf16.mxu0 0
    %429 = vmatpush1.bf16.xpose.msra.mxu0 %v426
    %430 = vmatprep.subr.bf16.mxu0 0
    %431 = vmatpush1.bf16.xpose.msra.mxu0 0
    %432 = vmatprep.subr.bf16.mxu0 0
    %433 = vmatpush1.bf16.xpose.msra.mxu0 0
    %434 = vmatprep.subr.bf16.mxu0 0
    %435 = vmatpush1.bf16.xpose.msra.mxu0 0
    %436 = vmatprep.subr.bf16.mxu0 0
    %437 = vmatpush1.bf16.xpose.msra.mxu0 0
    %438 = vmatprep.subr.bf16.mxu0 0
    %439 = vmatpush1.bf16.xpose.msra.mxu0 0
    %440 = vmatprep.subr.bf16.mxu0 0
    %441 = vmatpush1.bf16.xpose.msra.mxu0 0
    %442 = vmatprep.subr.bf16.mxu0 0
    %443 = vmatpush1.bf16.xpose.msra.mxu0 0
    %444 = vmatprep.subr.bf16.mxu0 0
    %445 = vmatpush1.bf16.xpose.msra.mxu0 0
    %446 = vmatprep.subr.bf16.mxu0 0
    %447 = vmatpush1.bf16.xpose.msra.mxu0 0
    %448 = vmatprep.subr.bf16.mxu0 0
    %449 = vmatpush1.bf16.xpose.msra.mxu0 0
    %450 = vmatprep.subr.bf16.mxu0 0
    %451 = vmatpush1.bf16.xpose.msra.mxu0 0
    %452 = vmatprep.subr.bf16.mxu0 0
    %453 = vmatpush1.bf16.xpose.msra.mxu0 0
    %454 = vmatprep.subr.bf16.mxu0 0
    %455 = vmatpush1.bf16.xpose.msra.mxu0 0
    %456 = vmatprep.subr.bf16.mxu0 0
    %457 = vmatpush1.bf16.xpose.msra.mxu0 0
    %458 = vmatprep.subr.bf16.mxu0 0
    %459 = vmatpush1.bf16.xpose.msra.mxu0 0
    %460 = vmatprep.mubr.bf16.mxu0 0
    %461 = vmatmul.mubr.bf16.gmra.mrb[0].mxu0 %v423
    %v462 = vpop.f32.mrb[0].mxu0
    %v463 = vadd.f32 0.0, %v462
    %v464 = vpop.f32.mrb[0].mxu0
    %v465 = vpop.f32.mrb[0].mxu0
    %v466 = vpop.f32.mrb[0].mxu0
    %467 = vdwg.mxu0
    %v468 = vsel %vm365, 1, 0
    %vm469 = vcmp.eq.s32.totalorder %v468, 1
    %v470 = vsel %vm469, %v414, -1e+09
    %v471 = vsel %vm469, %v463, -1e+09
    %vm472 = vcmask 64512
    %v473 = vsel %vm472, %v470, -inf
    %474 = vmax.xlane.f32.xlu0 %v473
    %v475 = vpop.xlane.xlu0 %474
    %v476 = vsel %vm472, %v471, -inf
    %477 = vmax.xlane.f32.xlu0 %v476
    %v478 = vpop.xlane.xlu0 %477
    %v479 = vsub.f32 %v470, %v475
    %v480 = vsub.f32 %v471, %v478
    %v481 = vmul.f32 %v479, 1.442695
    %v482 = vpow.pop %v481
    %v483 = vmul.f32 %v480, 1.442695
    %v484 = vpow.pop %v483
    %v485 = vsel %vm472, %v482, 0.0
    %486 = vadd.xlane.f32.xlu0 %v485
    %v487 = vpop.xlane.xlu0 %486
    %v488 = vsel %vm472, %v484, 0.0
    %489 = vadd.xlane.f32.xlu0 %v488
    %v490 = vpop.xlane.xlu0 %489
    %v491 = vrcp.pop %v487
    %v492 = vrcp.pop %v490
    %v493 = vmul.f32 %v482, %v491
    %v494 = vmul.f32 %v484, %v492
    %v495 = vpack.c.bf16 %v493, %v493
    %v496 = vpack.c.bf16 %v494, %v494
    %v498 = vsel %vm472, %v495, 0
    %vm500 = vcmask 1043456
    %v502 = vsel %vm500, %v368, 0
    %504 = vmatprep.subr.bf16.mxu0 0
    %505 = vmatpush1.bf16.msra.mxu0 %v502
    %506 = vmatprep.subr.bf16.mxu0 0
    %507 = vmatpush1.bf16.msra.mxu0 0
    %508 = vmatprep.subr.bf16.mxu0 0
    %509 = vmatpush1.bf16.msra.mxu0 0
    %510 = vmatprep.subr.bf16.mxu0 0
    %511 = vmatpush1.bf16.msra.mxu0 0
    %512 = vmatprep.subr.bf16.mxu0 0
    %513 = vmatpush1.bf16.msra.mxu0 0
    %514 = vmatprep.subr.bf16.mxu0 0
    %515 = vmatpush1.bf16.msra.mxu0 0
    %516 = vmatprep.subr.bf16.mxu0 0
    %517 = vmatpush1.bf16.msra.mxu0 0
    %518 = vmatprep.subr.bf16.mxu0 0
    %519 = vmatpush1.bf16.msra.mxu0 0
    %520 = vmatprep.subr.bf16.mxu0 0
    %521 = vmatpush1.bf16.msra.mxu0 0
    %522 = vmatprep.subr.bf16.mxu0 0
    %523 = vmatpush1.bf16.msra.mxu0 0
    %524 = vmatprep.subr.bf16.mxu0 0
    %525 = vmatpush1.bf16.msra.mxu0 0
    %526 = vmatprep.subr.bf16.mxu0 0
    %527 = vmatpush1.bf16.msra.mxu0 0
    %528 = vmatprep.subr.bf16.mxu0 0
    %529 = vmatpush1.bf16.msra.mxu0 0
    %530 = vmatprep.subr.bf16.mxu0 0
    %531 = vmatpush1.bf16.msra.mxu0 0
    %532 = vmatprep.subr.bf16.mxu0 0
    %533 = vmatpush1.bf16.msra.mxu0 0
    %534 = vmatprep.subr.bf16.mxu0 0
    %535 = vmatpush1.bf16.msra.mxu0 0
    %536 = vmatprep.mubr.bf16.mxu0 0
    %537 = vmatmul.mubr.bf16.gmra.mrb[0].mxu0 %v498
    %v538 = vpop.f32.mrb[0].mxu0
    %v539 = vadd.f32 0.0, %v538
    %v540 = vpop.f32.mrb[0].mxu0
    %v541 = vpop.f32.mrb[0].mxu0
    %v542 = vpop.f32.mrb[0].mxu0
    %543 = vdwg.mxu0
    %v545 = vsel %vm472, %v496, 0
    %v548 = vsel %vm500, %v369, 0
    %550 = vmatprep.subr.bf16.mxu0 0
    %551 = vmatpush1.bf16.msra.mxu0 %v548
    %552 = vmatprep.subr.bf16.mxu0 0
    %553 = vmatpush1.bf16.msra.mxu0 0
    %554 = vmatprep.subr.bf16.mxu0 0
    %555 = vmatpush1.bf16.msra.mxu0 0
    %556 = vmatprep.subr.bf16.mxu0 0
    %557 = vmatpush1.bf16.msra.mxu0 0
    %558 = vmatprep.subr.bf16.mxu0 0
    %559 = vmatpush1.bf16.msra.mxu0 0
    %560 = vmatprep.subr.bf16.mxu0 0
    %561 = vmatpush1.bf16.msra.mxu0 0
    %562 = vmatprep.subr.bf16.mxu0 0
    %563 = vmatpush1.bf16.msra.mxu0 0
    %564 = vmatprep.subr.bf16.mxu0 0
    %565 = vmatpush1.bf16.msra.mxu0 0
    %566 = vmatprep.subr.bf16.mxu0 0
    %567 = vmatpush1.bf16.msra.mxu0 0
    %568 = vmatprep.subr.bf16.mxu0 0
    %569 = vmatpush1.bf16.msra.mxu0 0
    %570 = vmatprep.subr.bf16.mxu0 0
    %571 = vmatpush1.bf16.msra.mxu0 0
    %572 = vmatprep.subr.bf16.mxu0 0
    %573 = vmatpush1.bf16.msra.mxu0 0
    %574 = vmatprep.subr.bf16.mxu0 0
    %575 = vmatpush1.bf16.msra.mxu0 0
    %576 = vmatprep.subr.bf16.mxu0 0
    %577 = vmatpush1.bf16.msra.mxu0 0
    %578 = vmatprep.subr.bf16.mxu0 0
    %579 = vmatpush1.bf16.msra.mxu0 0
    %580 = vmatprep.subr.bf16.mxu0 0
    %581 = vmatpush1.bf16.msra.mxu0 0
    %582 = vmatprep.mubr.bf16.mxu0 0
    %583 = vmatmul.mubr.bf16.gmra.mrb[0].mxu0 %v545
    %v584 = vpop.f32.mrb[0].mxu0
    %v585 = vadd.f32 0.0, %v584
    %v586 = vpop.f32.mrb[0].mxu0
    %v587 = vpop.f32.mrb[0].mxu0
    %v588 = vpop.f32.mrb[0].mxu0
    %589 = vdwg.mxu0
    %590 = vrot.lane.b32.xlu0 %v366, 96
    %v591 = vpop.permute.xlu0 %590
    %592 = vrot.lane.b32.xlu0 %v366, 32
    %v593 = vpop.permute.xlu0 %592
    %v595 = vsel %vm186, %v591, 0
    %v598 = vsel %vm186, %v593, 0
    %600 = vmatprep.subr.bf16.mxu0 0
    %601 = vmatpush1.bf16.xpose.msra.mxu0 %v598
    %602 = vmatprep.subr.bf16.mxu0 0
    %603 = vmatpush1.bf16.xpose.msra.mxu0 0
    %604 = vmatprep.subr.bf16.mxu0 0
    %605 = vmatpush1.bf16.xpose.msra.mxu0 0
    %606 = vmatprep.subr.bf16.mxu0 0
    %607 = vmatpush1.bf16.xpose.msra.mxu0 0
    %608 = vmatprep.subr.bf16.mxu0 0
    %609 = vmatpush1.bf16.xpose.msra.mxu0 0
    %610 = vmatprep.subr.bf16.mxu0 0
    %611 = vmatpush1.bf16.xpose.msra.mxu0 0
    %612 = vmatprep.subr.bf16.mxu0 0
    %613 = vmatpush1.bf16.xpose.msra.mxu0 0
    %614 = vmatprep.subr.bf16.mxu0 0
    %615 = vmatpush1.bf16.xpose.msra.mxu0 0
    %616 = vmatprep.subr.bf16.mxu0 0
    %617 = vmatpush1.bf16.xpose.msra.mxu0 0
    %618 = vmatprep.subr.bf16.mxu0 0
    %619 = vmatpush1.bf16.xpose.msra.mxu0 0
    %620 = vmatprep.subr.bf16.mxu0 0
    %621 = vmatpush1.bf16.xpose.msra.mxu0 0
    %622 = vmatprep.subr.bf16.mxu0 0
    %623 = vmatpush1.bf16.xpose.msra.mxu0 0
    %624 = vmatprep.subr.bf16.mxu0 0
    %625 = vmatpush1.bf16.xpose.msra.mxu0 0
    %626 = vmatprep.subr.bf16.mxu0 0
    %627 = vmatpush1.bf16.xpose.msra.mxu0 0
    %628 = vmatprep.subr.bf16.mxu0 0
    %629 = vmatpush1.bf16.xpose.msra.mxu0 0
    %630 = vmatprep.subr.bf16.mxu0 0
    %631 = vmatpush1.bf16.xpose.msra.mxu0 0
    %632 = vmatprep.mubr.bf16.mxu0 0
    %633 = vmatmul.mubr.bf16.gmra.mrb[0].mxu0 %v595
    %v634 = vpop.f32.mrb[0].mxu0
    %v635 = vadd.f32 0.0, %v634
    %v636 = vpop.f32.mrb[0].mxu0
    %v637 = vpop.f32.mrb[0].mxu0
    %v638 = vpop.f32.mrb[0].mxu0
    %639 = vdwg.mxu0
    %640 = vrot.lane.b32.xlu0 %v367, 96
    %v641 = vpop.permute.xlu0 %640
    %642 = vrot.lane.b32.xlu0 %v367, 32
    %v643 = vpop.permute.xlu0 %642
    %v645 = vsel %vm186, %v641, 0
    %v648 = vsel %vm186, %v643, 0
    %650 = vmatprep.subr.bf16.mxu0 0
    %651 = vmatpush1.bf16.xpose.msra.mxu0 %v648
    %652 = vmatprep.subr.bf16.mxu0 0
    %653 = vmatpush1.bf16.xpose.msra.mxu0 0
    %654 = vmatprep.subr.bf16.mxu0 0
    %655 = vmatpush1.bf16.xpose.msra.mxu0 0
    %656 = vmatprep.subr.bf16.mxu0 0
    %657 = vmatpush1.bf16.xpose.msra.mxu0 0
    %658 = vmatprep.subr.bf16.mxu0 0
    %659 = vmatpush1.bf16.xpose.msra.mxu0 0
    %660 = vmatprep.subr.bf16.mxu0 0
    %661 = vmatpush1.bf16.xpose.msra.mxu0 0
    %662 = vmatprep.subr.bf16.mxu0 0
    %663 = vmatpush1.bf16.xpose.msra.mxu0 0
    %664 = vmatprep.subr.bf16.mxu0 0
    %665 = vmatpush1.bf16.xpose.msra.mxu0 0
    %666 = vmatprep.subr.bf16.mxu0 0
    %667 = vmatpush1.bf16.xpose.msra.mxu0 0
    %668 = vmatprep.subr.bf16.mxu0 0
    %669 = vmatpush1.bf16.xpose.msra.mxu0 0
    %670 = vmatprep.subr.bf16.mxu0 0
    %671 = vmatpush1.bf16.xpose.msra.mxu0 0
    %672 = vmatprep.subr.bf16.mxu0 0
    %673 = vmatpush1.bf16.xpose.msra.mxu0 0
    %674 = vmatprep.subr.bf16.mxu0 0
    %675 = vmatpush1.bf16.xpose.msra.mxu0 0
    %676 = vmatprep.subr.bf16.mxu0 0
    %677 = vmatpush1.bf16.xpose.msra.mxu0 0
    %678 = vmatprep.subr.bf16.mxu0 0
    %679 = vmatpush1.bf16.xpose.msra.mxu0 0
    %680 = vmatprep.subr.bf16.mxu0 0
    %681 = vmatpush1.bf16.xpose.msra.mxu0 0
    %682 = vmatprep.mubr.bf16.mxu0 0
    %683 = vmatmul.mubr.bf16.gmra.mrb[0].mxu0 %v645
    %v684 = vpop.f32.mrb[0].mxu0
    %v685 = vadd.f32 0.0, %v684
    %v686 = vpop.f32.mrb[0].mxu0
    %v687 = vpop.f32.mrb[0].mxu0
    %v688 = vpop.f32.mrb[0].mxu0
    %689 = vdwg.mxu0
    %v690 = vsel %vm469, %v635, -1e+09
    %v691 = vsel %vm469, %v685, -1e+09
    %v692 = vsel %vm472, %v690, -inf
    %693 = vmax.xlane.f32.xlu0 %v692
    %v694 = vpop.xlane.xlu0 %693
    %v695 = vsel %vm472, %v691, -inf
    %696 = vmax.xlane.f32.xlu0 %v695
    %v697 = vpop.xlane.xlu0 %696
    %v698 = vsub.f32 %v690, %v694
    %v699 = vsub.f32 %v691, %v697
    %v700 = vmul.f32 %v698, 1.442695
    %v701 = vpow.pop %v700
    %v702 = vmul.f32 %v699, 1.442695
    %v703 = vpow.pop %v702
    %v704 = vsel %vm472, %v701, 0.0
    %705 = vadd.xlane.f32.xlu0 %v704
    %v706 = vpop.xlane.xlu0 %705
    %v707 = vsel %vm472, %v703, 0.0
    %708 = vadd.xlane.f32.xlu0 %v707
    %v709 = vpop.xlane.xlu0 %708
    %v710 = vrcp.pop %v706
    %v711 = vrcp.pop %v709
    %v712 = vmul.f32 %v701, %v710
    %v713 = vmul.f32 %v703, %v711
    %v714 = vpack.c.bf16 %v712, %v712
    %v715 = vpack.c.bf16 %v713, %v713
    %717 = vrot.lane.b32.xlu0 %v368, 96
    %v718 = vpop.permute.xlu0 %717
    %v720 = vsel %vm472, %v714, 0
    %v723 = vsel %vm500, %v718, 0
    %725 = vmatprep.subr.bf16.mxu0 0
    %726 = vmatpush1.bf16.msra.mxu0 %v723
    %727 = vmatprep.subr.bf16.mxu0 0
    %728 = vmatpush1.bf16.msra.mxu0 0
    %729 = vmatprep.subr.bf16.mxu0 0
    %730 = vmatpush1.bf16.msra.mxu0 0
    %731 = vmatprep.subr.bf16.mxu0 0
    %732 = vmatpush1.bf16.msra.mxu0 0
    %733 = vmatprep.subr.bf16.mxu0 0
    %734 = vmatpush1.bf16.msra.mxu0 0
    %735 = vmatprep.subr.bf16.mxu0 0
    %736 = vmatpush1.bf16.msra.mxu0 0
    %737 = vmatprep.subr.bf16.mxu0 0
    %738 = vmatpush1.bf16.msra.mxu0 0
    %739 = vmatprep.subr.bf16.mxu0 0
    %740 = vmatpush1.bf16.msra.mxu0 0
    %741 = vmatprep.subr.bf16.mxu0 0
    %742 = vmatpush1.bf16.msra.mxu0 0
    %743 = vmatprep.subr.bf16.mxu0 0
    %744 = vmatpush1.bf16.msra.mxu0 0
    %745 = vmatprep.subr.bf16.mxu0 0
    %746 = vmatpush1.bf16.msra.mxu0 0
    %747 = vmatprep.subr.bf16.mxu0 0
    %748 = vmatpush1.bf16.msra.mxu0 0
    %749 = vmatprep.subr.bf16.mxu0 0
    %750 = vmatpush1.bf16.msra.mxu0 0
    %751 = vmatprep.subr.bf16.mxu0 0
    %752 = vmatpush1.bf16.msra.mxu0 0
    %753 = vmatprep.subr.bf16.mxu0 0
    %754 = vmatpush1.bf16.msra.mxu0 0
    %755 = vmatprep.subr.bf16.mxu0 0
    %756 = vmatpush1.bf16.msra.mxu0 0
    %757 = vmatprep.mubr.bf16.mxu0 0
    %758 = vmatmul.mubr.bf16.gmra.mrb[0].mxu0 %v720
    %v759 = vpop.f32.mrb[0].mxu0
    %v760 = vadd.f32 0.0, %v759
    %v761 = vpop.f32.mrb[0].mxu0
    %v762 = vpop.f32.mrb[0].mxu0
    %v763 = vpop.f32.mrb[0].mxu0
    %764 = vdwg.mxu0
    %766 = vrot.lane.b32.xlu0 %v369, 96
    %v767 = vpop.permute.xlu0 %766
    %v769 = vsel %vm472, %v715, 0
    %v772 = vsel %vm500, %v767, 0
    %774 = vmatprep.subr.bf16.mxu0 0
    %775 = vmatpush1.bf16.msra.mxu0 %v772
    %776 = vmatprep.subr.bf16.mxu0 0
    %777 = vmatpush1.bf16.msra.mxu0 0
    %778 = vmatprep.subr.bf16.mxu0 0
    %779 = vmatpush1.bf16.msra.mxu0 0
    %780 = vmatprep.subr.bf16.mxu0 0
    %781 = vmatpush1.bf16.msra.mxu0 0
    %782 = vmatprep.subr.bf16.mxu0 0
    %783 = vmatpush1.bf16.msra.mxu0 0
    %784 = vmatprep.subr.bf16.mxu0 0
    %785 = vmatpush1.bf16.msra.mxu0 0
    %786 = vmatprep.subr.bf16.mxu0 0
    %787 = vmatpush1.bf16.msra.mxu0 0
    %788 = vmatprep.subr.bf16.mxu0 0
    %789 = vmatpush1.bf16.msra.mxu0 0
    %790 = vmatprep.subr.bf16.mxu0 0
    %791 = vmatpush1.bf16.msra.mxu0 0
    %792 = vmatprep.subr.bf16.mxu0 0
    %793 = vmatpush1.bf16.msra.mxu0 0
    %794 = vmatprep.subr.bf16.mxu0 0
    %795 = vmatpush1.bf16.msra.mxu0 0
    %796 = vmatprep.subr.bf16.mxu0 0
    %797 = vmatpush1.bf16.msra.mxu0 0
    %798 = vmatprep.subr.bf16.mxu0 0
    %799 = vmatpush1.bf16.msra.mxu0 0
    %800 = vmatprep.subr.bf16.mxu0 0
    %801 = vmatpush1.bf16.msra.mxu0 0
    %802 = vmatprep.subr.bf16.mxu0 0
    %803 = vmatpush1.bf16.msra.mxu0 0
    %804 = vmatprep.subr.bf16.mxu0 0
    %805 = vmatpush1.bf16.msra.mxu0 0
    %806 = vmatprep.mubr.bf16.mxu0 0
    %807 = vmatmul.mubr.bf16.gmra.mrb[0].mxu0 %v769
    %v808 = vpop.f32.mrb[0].mxu0
    %v809 = vadd.f32 0.0, %v808
    %v810 = vpop.f32.mrb[0].mxu0
    %v811 = vpop.f32.mrb[0].mxu0
    %v812 = vpop.f32.mrb[0].mxu0
    %813 = vdwg.mxu0
    %816 = vrot.lane.b32.xlu0 %v760, 32
    %v817 = vpop.permute.xlu0 %816
    %818 = vrot.lane.b32.xlu0 %v809, 32
    %v819 = vpop.permute.xlu0 %818
    %v822 = vsel %vm186, %v539, %v817
    %v823 = vsel %vm186, %v585, %v819
    %v824 = vld [vmem:[#allocation13] sm:$0x7]
    %v825 = vpack.c.bf16 %v823, %v822
    %v826 = vld [vmem:[#allocation8] sm:$0xf]
    %v827 = vld [vmem:[#allocation8 + $0x4] sm:$0xf]
    %v828 = vld [vmem:[#allocation8 + $0x8] sm:$0xf]
    %v829 = vld [vmem:[#allocation8 + $0xc] sm:$0xf]
    %v830 = vld [vmem:[#allocation8 + $0x10] sm:$0xf]
    %v831 = vld [vmem:[#allocation8 + $0x14] sm:$0xf]
    %v832 = vld [vmem:[#allocation8 + $0x18] sm:$0xf]
    %v833 = vld [vmem:[#allocation8 + $0x1c] sm:$0xf]
    %v842 = vunpack.c.l.b16 %v826
    %v843 = vunpack.c.l.b16 %v827
    %v844 = vunpack.c.l.b16 %v828
    %v845 = vunpack.c.l.b16 %v829
    %v846 = vunpack.c.l.b16 %v830
    %v847 = vunpack.c.l.b16 %v831
    %v848 = vunpack.c.l.b16 %v832
    %v849 = vunpack.c.l.b16 %v833
    %v850 = vpack.c.b16 %v843, %v842
    %v851 = vpack.c.b16 %v845, %v844
    %v852 = vpack.c.b16 %v847, %v846
    %v853 = vpack.c.b16 %v849, %v848
    %vm858 = vcmask 523264
    %v860 = vsel %vm858, %v825, 0
    %862 = vmatprep.subr.bf16.mxu0 0
    %863 = vmatpush1.bf16.msra.mxu0 %v850
    %864 = vmatprep.subr.bf16.mxu0 0
    %865 = vmatpush1.bf16.msra.mxu0 %v851
    %866 = vmatprep.subr.bf16.mxu0 0
    %867 = vmatpush1.bf16.msra.mxu0 %v852
    %868 = vmatprep.subr.bf16.mxu0 0
    %869 = vmatpush1.bf16.msra.mxu0 %v853
    %870 = vmatprep.subr.bf16.mxu0 0
    %871 = vmatpush1.bf16.msra.mxu0 0
    %872 = vmatprep.subr.bf16.mxu0 0
    %873 = vmatpush1.bf16.msra.mxu0 0
    %874 = vmatprep.subr.bf16.mxu0 0
    %875 = vmatpush1.bf16.msra.mxu0 0
    %876 = vmatprep.subr.bf16.mxu0 0
    %877 = vmatpush1.bf16.msra.mxu0 0
    %878 = vmatprep.subr.bf16.mxu0 0
    %879 = vmatpush1.bf16.msra.mxu0 0
    %880 = vmatprep.subr.bf16.mxu0 0
    %881 = vmatpush1.bf16.msra.mxu0 0
    %882 = vmatprep.subr.bf16.mxu0 0
    %883 = vmatpush1.bf16.msra.mxu0 0
    %884 = vmatprep.subr.bf16.mxu0 0
    %885 = vmatpush1.bf16.msra.mxu0 0
    %886 = vmatprep.subr.bf16.mxu0 0
    %887 = vmatpush1.bf16.msra.mxu0 0
    %888 = vmatprep.subr.bf16.mxu0 0
    %889 = vmatpush1.bf16.msra.mxu0 0
    %890 = vmatprep.subr.bf16.mxu0 0
    %891 = vmatpush1.bf16.msra.mxu0 0
    %892 = vmatprep.subr.bf16.mxu0 0
    %893 = vmatpush1.bf16.msra.mxu0 0
    %894 = vmatprep.mubr.bf16.mxu0 0
    %895 = vmatmul.mubr.bf16.gmra.mrb[0].mxu0 %v860
    %v896 = vpop.f32.mrb[0].mxu0
    %v897 = vadd.f32 0.0, %v896
    %v898 = vpop.f32.mrb[0].mxu0
    %v899 = vpop.f32.mrb[0].mxu0
    %v900 = vadd.f32 0.0, %v899
    %v901 = vpop.f32.mrb[0].mxu0
    %902 = vdwg.mxu0
    %v903 = vadd.f32 %v118, %v897
    %v904 = vadd.f32 %v120, %v900
    %v905 = vlaneseq
    %v906 = vshrl.u32 %v905, 7
    %v907 = vsub.s32 0, %v906
    %v908 = vrot.slane %v824, %v907
    %v909 = vadd.f32 %v903, %v908
    %v910 = vadd.f32 %v904, %v908
    %v911 = vsel %vm186, %v909, 0.0
    %912 = vadd.xlane.f32.xlu0 %v911
    %v913 = vpop.xlane.xlu0 %912
    %v914 = vsel %vm186, %v910, 0.0
    %915 = vadd.xlane.f32.xlu0 %v914
    %v916 = vpop.xlane.xlu0 %915
    %v917 = vrcp.pop 32.0
    %v918 = vmul.f32 %v913, %v917
    %v919 = vmul.f32 %v916, %v917
    %v920 = vsub.f32 %v909, %v918
    %v921 = vsub.f32 %v910, %v919
    %v922 = vmul.f32 %v920, %v920
    %v923 = vmul.f32 %v921, %v921
    %v924 = vsel %vm186, %v922, 0.0
    %925 = vadd.xlane.f32.xlu0 %v924
    %v926 = vpop.xlane.xlu0 %925
    %v927 = vsel %vm186, %v923, 0.0
    %928 = vadd.xlane.f32.xlu0 %v927
    %v929 = vpop.xlane.xlu0 %928
    %v930 = vmul.f32 %v926, %v917
    %v931 = vmul.f32 %v929, %v917
    %v932 = vadd.f32 %v930, 1e-05
    %v933 = vadd.f32 %v931, 1e-05
    %v934 = vrsqrt.pop %v932
    %v935 = vrsqrt.pop %v933
    %v936 = vmul.f32 %v920, %v934
    %v937 = vmul.f32 %v921, %v935
    %v938 = vlaneseq
    %v939 = vshrl.u32 %v938, 7
    %v940 = vsub.s32 1, %v939
    %v941 = vrot.slane %v824, %v940
    %v942 = vmul.f32 %v941, %v936
    %v943 = vmul.f32 %v941, %v937
    %v944 = vlaneseq
    %v945 = vshrl.u32 %v944, 7
    %v946 = vsub.s32 2, %v945
    %v947 = vrot.slane %v824, %v946
    %v948 = vadd.f32 %v942, %v947
    %v949 = vadd.f32 %v943, %v947
    %950 = vst.msk [vmem:[#allocation14] sm:$0xff] %vm186, %v948
    %951 = vst.msk [vmem:[#allocation14 + $0x8] sm:$0xff] %vm186, %v949
    // Predicated region
    $region58: #{block_forward.1} parent=1 // pred_check
      _
    $region59: #{block_forward.1} parent=1 // pred_check_branch
      %953 = sbr.rel (0) target = $region61
    $region60: #{block_forward.1} parent=1 // pred_region
      %s955 = ssub.s32 256, 256
      %956 = vsyncadd [#allocation4], %s955
      %s957 = sshll.u32 [#allocation14], 4
      %s958 = int_to_ptr.vmem [resolvable:$true] %s957
      %963 = dma.vmem_to_hbm [thread:$0]  %s958, 256, %s7, [#allocation4], 128, 128, 8
    $region61: #{block_forward.1} parent=1 // pred_fallthru
      _
    // Predicated region
    $region62: #{block_forward.1} parent=1 // pred_check
      _
    $region63: #{block_forward.1} parent=1 // pred_check_branch
      %965 = sbr.rel (0) target = $region65
    $region64: #{block_forward.1} parent=1 // pred_region
      %966 = dma.done [#allocation4], 256
    $region65: #{block_forward.1} parent=1 // pred_fallthru
      _
    %967 = vsyncpa [#allocation3], 1
    %968 = vsyncpa [#allocation6], 1
    %969 = vsyncpa [#allocation9], 1
    %970 = vsyncpa [#allocation12], 1
    %971 = vsyncpa [#allocation4], 1

// kernel: block_forward.1
$region0: #{block_forward.1}
  #allocation0 [shape = 'u32[]', space=smem, size = 0x4, offset = 0x4, fixed_abs, tag = 'smem constant byte address 0x4 - core index']
  #allocation1 [shape = 'u32[144,128]{1,0:T(1,128)}', space=vmem, size = 0x12000, scoped, tag = 'internal scratch']
  %s0 = inlined_call_operand.hbm [shape: f32[2,16,32], index: 0, kind: input, shape index: {}]
  %s1 = inlined_call_operand.hbm [shape: bf16[2,32,128], index: 1, kind: input, shape index: {}]
  %s2 = inlined_call_operand.hbm [shape: bf16[32,64], index: 2, kind: input, shape index: {}]
  %s3 = inlined_call_operand.hbm [shape: bf16[64,32], index: 3, kind: input, shape index: {}]
  %s4 = inlined_call_operand.hbm [shape: f32[1,128], index: 4, kind: input, shape index: {}]
  %s5 = inlined_call_operand.hbm [shape: f32[1,64], index: 5, kind: input, shape index: {}]
  %s6 = inlined_call_operand.hbm [shape: f32[3,32], index: 6, kind: input, shape index: {}]
  %s7 = inlined_call_operand.hbm [shape: f32[2,8,32], index: 7, kind: output, shape index: {}]
  %s8 = sld [smem:[#allocation0]]
  $region66: #{block_forward.1} parent=0
    _
  %s10 = ssub.s32 1, %s8
  %s11 = scalar_select 0, %s10, %s8
  $region1: #{block_forward.1} parent=0
    #allocation2 [shape = 'u8[16384]{0}', space=vmem, size = 0x4000, scoped, tag = 'input window, operand 0, single buffered']
    #allocation3 [shape = 's32[1]{0}', space=sflag, size = 0x4, scoped, tag = 'scoped memory for block_forward.1']
    #allocation4 [shape = 's32[1]{0}', space=sflag, size = 0x4, scoped, tag = 'scoped memory for block_forward.1']
    #allocation5 [shape = 'u8[16384]{0}', space=vmem, size = 0x4000, scoped, tag = 'input window, operand 1, single buffered']
    #allocation6 [shape = 's32[1]{0}', space=sflag, size = 0x4, scoped, tag = 'scoped memory for block_forward.1']
    #allocation7 [shape = 'u8[8192]{0}', space=vmem, size = 0x2000, scoped, tag = 'input window, operand 2, single buffered']
    #allocation8 [shape = 'u8[16384]{0}', space=vmem, size = 0x4000, scoped, tag = 'input window, operand 3, single buffered']
    #allocation9 [shape = 's32[1]{0}', space=sflag, size = 0x4, scoped, tag = 'scoped memory for block_forward.1']
    #allocation10 [shape = 'u8[512]{0}', space=vmem, size = 0x400, scoped, tag = 'input window, operand 4, single buffered']
    #allocation11 [shape = 'u8[512]{0}', space=vmem, size = 0x400, scoped, tag = 'input window, operand 5, single buffered']
    #allocation12 [shape = 's32[1]{0}', space=sflag, size = 0x4, scoped, tag = 'scoped memory for block_forward.1']
    #allocation13 [shape = 'u8[2048]{0}', space=vmem, size = 0x800, scoped, tag = 'input window, operand 6, single buffered']
    #allocation14 [shape = 'u8[8192]{0}', space=vmem, size = 0x2000, scoped, tag = 'output window, operand 0, single buffered']
    %12 = vsyncpa [#allocation3], 0
    %13 = vsyncpa [#allocation6], 0
    %14 = vsyncpa [#allocation9], 0
    %15 = vsyncpa [#allocation12], 0
    %16 = vsyncpa [#allocation4], 0
    // Predicated region
    $region2: #{block_forward.1} parent=1 // pred_check
      _
    $region3: #{block_forward.1} parent=1 // pred_check_branch
      %18 = sbr.rel (0) target = $region5
    $region4: #{block_forward.1} parent=1 // pred_region
      %s20 = ssub.s32 512, 512
      %21 = vsyncadd [#allocation3], %s20
      %s22 = sshll.u32 [#allocation2], 4
      %s23 = int_to_ptr.vmem [resolvable:$true] %s22
      %28 = dma.hbm_to_vmem [thread:$0]  %s0, 512, %s23, [#allocation3], 128, 128, 8
    $region5: #{block_forward.1} parent=1 // pred_fallthru
      _
    // Predicated region
    $region6: #{block_forward.1} parent=1 // pred_check
      _
    $region7: #{block_forward.1} parent=1 // pred_check_branch
      %30 = sbr.rel (0) target = $region9
    $region8: #{block_forward.1} parent=1 // pred_region
      %s32 = ssub.s32 512, 512
      %33 = vsyncadd [#allocation6], %s32
      %s34 = sshll.u32 [#allocation5], 4
      %s35 = int_to_ptr.vmem [resolvable:$true] %s34
      %40 = dma.hbm_to_vmem [thread:$0]  %s1, 512, %s35, [#allocation6], 64, 64, 4
    $region9: #{block_forward.1} parent=1 // pred_fallthru
      _
    // Predicated region
    $region10: #{block_forward.1} parent=1 // pred_check
      _
    $region11: #{block_forward.1} parent=1 // pred_check_branch
      %42 = sbr.rel (0) target = $region13
    $region12: #{block_forward.1} parent=1 // pred_region
      %s44 = ssub.s32 256, 256
      %45 = vsyncadd [#allocation6], %s44
      %s46 = sshll.u32 [#allocation7], 4
      %s47 = int_to_ptr.vmem [resolvable:$true] %s46
      %52 = dma.hbm_to_vmem [thread:$0]  %s2, 256, %s47, [#allocation6], 64, 64, 4
    $region13: #{block_forward.1} parent=1 // pred_fallthru
      _
    // Predicated region
    $region14: #{block_forward.1} parent=1 // pred_check
      _
    $region15: #{block_forward.1} parent=1 // pred_check_branch
      %54 = sbr.rel (0) target = $region17
    $region16: #{block_forward.1} parent=1 // pred_region
      %s56 = ssub.s32 512, 512
      %57 = vsyncadd [#allocation9], %s56
      %s58 = sshll.u32 [#allocation8], 4
      %s59 = int_to_ptr.vmem [resolvable:$true] %s58
      %64 = dma.hbm_to_vmem [thread:$0]  %s3, 512, %s59, [#allocation9], 64, 64, 4
    $region17: #{block_forward.1} parent=1 // pred_fallthru
      _
    // Predicated region
    $region18: #{block_forward.1} parent=1 // pred_check
      _
    $region19: #{block_forward.1} parent=1 // pred_check_branch
      %66 = sbr.rel (0) target = $region21
    $region20: #{block_forward.1} parent=1 // pred_region
      %s68 = ssub.s32 16, 16
      %69 = vsyncadd [#allocation9], %s68
      %s71 = sshll.u32 [#allocation10], 4
      %s72 = int_to_ptr.vmem [resolvable:$true] %s71
      %74 = dma.hbm_to_vmem [thread:$0]  %s4, 16, %s72, [#allocation9]
    $region21: #{block_forward.1} parent=1 // pred_fallthru
      _
    // Predicated region
    $region22: #{block_forward.1} parent=1 // pred_check
      _
    $region23: #{block_forward.1} parent=1 // pred_check_branch
      %76 = sbr.rel (0) target = $region25
    $region24: #{block_forward.1} parent=1 // pred_region
      %s78 = ssub.s32 16, 16
      %79 = vsyncadd [#allocation12], %s78
      %s81 = sshll.u32 [#allocation11], 4
      %s82 = int_to_ptr.vmem [resolvable:$true] %s81
      %84 = dma.hbm_to_vmem [thread:$0]  %s5, 16, %s82, [#allocation12]
    $region25: #{block_forward.1} parent=1 // pred_fallthru
      _
    // Predicated region
    $region26: #{block_forward.1} parent=1 // pred_check
      _
    $region27: #{block_forward.1} parent=1 // pred_check_branch
      %86 = sbr.rel (0) target = $region29
    $region28: #{block_forward.1} parent=1 // pred_region
      %s88 = ssub.s32 64, 64
      %89 = vsyncadd [#allocation12], %s88
      %s91 = sshll.u32 [#allocation13], 4
      %s92 = int_to_ptr.vmem [resolvable:$true] %s91
      %94 = dma.hbm_to_vmem [thread:$0]  %s6, 64, %s92, [#allocation12]
    $region29: #{block_forward.1} parent=1 // pred_fallthru
      _
    // Predicated region
    $region30: #{block_forward.1} parent=1 // pred_check
      _
    $region31: #{block_forward.1} parent=1 // pred_check_branch
      %96 = sbr.rel (0) target = $region33
    $region32: #{block_forward.1} parent=1 // pred_region
      %97 = dma.done [#allocation3], 512
    $region33: #{block_forward.1} parent=1 // pred_fallthru
      _
    // Predicated region
    $region34: #{block_forward.1} parent=1 // pred_check
      _
    $region35: #{block_forward.1} parent=1 // pred_check_branch
      %99 = sbr.rel (0) target = $region37
    $region36: #{block_forward.1} parent=1 // pred_region
      %100 = dma.done [#allocation6], 512
    $region37: #{block_forward.1} parent=1 // pred_fallthru
      _
    // Predicated region
    $region38: #{block_forward.1} parent=1 // pred_check
      _
    $region39: #{block_forward.1} parent=1 // pred_check_branch
      %102 = sbr.rel (0) target = $region41
    $region40: #{block_forward.1} parent=1 // pred_region
      %103 = dma.done [#allocation6], 256
    $region41: #{block_forward.1} parent=1 // pred_fallthru
      _
    // Predicated region
    $region42: #{block_forward.1} parent=1 // pred_check
      _
    $region43: #{block_forward.1} parent=1 // pred_check_branch
      %105 = sbr.rel (0) target = $region45
    $region44: #{block_forward.1} parent=1 // pred_region
      %106 = dma.done [#allocation9], 512
    $region45: #{block_forward.1} parent=1 // pred_fallthru
      _
    // Predicated region
    $region46: #{block_forward.1} parent=1 // pred_check
      _
    $region47: #{block_forward.1} parent=1 // pred_check_branch
      %108 = sbr.rel (0) target = $region49
    $region48: #{block_forward.1} parent=1 // pred_region
      %109 = dma.done [#allocation9], 16
    $region49: #{block_forward.1} parent=1 // pred_fallthru
      _
    // Predicated region
    $region50: #{block_forward.1} parent=1 // pred_check
      _
    $region51: #{block_forward.1} parent=1 // pred_check_branch
      %111 = sbr.rel (0) target = $region53
    $region52: #{block_forward.1} parent=1 // pred_region
      %112 = dma.done [#allocation12], 16
    $region53: #{block_forward.1} parent=1 // pred_fallthru
      _
    // Predicated region
    $region54: #{block_forward.1} parent=1 // pred_check
      _
    $region55: #{block_forward.1} parent=1 // pred_check_branch
      %114 = sbr.rel (0) target = $region57
    $region56: #{block_forward.1} parent=1 // pred_region
      %115 = dma.done [#allocation12], 64
    $region57: #{block_forward.1} parent=1 // pred_fallthru
      _
    %v117 = vld [vmem:[#allocation2] sm:$0xff]
    %v118 = vld [vmem:[#allocation2 + $0x8] sm:$0xff]
    %v119 = vld [vmem:[#allocation2 + $0x10] sm:$0xff]
    %v120 = vld [vmem:[#allocation2 + $0x18] sm:$0xff]
    %v121 = vpack.c.bf16 %v118, %v117
    %v122 = vpack.c.bf16 %v120, %v119
    %v125 = vunpack.c.h.b16 %v121
    %v126 = vunpack.c.h.b16 %v122
    %s127 = scalar_lea.vmem [#allocation5], 16
    %v128 = vld [vmem:[%s127] sm:$0xf]
    %v129 = vld [vmem:[%s127 + $0x4] sm:$0xf]
    %v130 = vld [vmem:[%s127 + $0x8] sm:$0xf]
    %v131 = vld [vmem:[%s127 + $0xc] sm:$0xf]
    %v132 = vunpack.c.l.b16 %v121
    %v133 = vunpack.c.l.b16 %v122
    %v134 = vpack.c.b16 %v132, %v132
    %v135 = vpack.c.b16 %v125, %v125
    %v136 = vpack.c.b16 %v133, %v133
    %v137 = vpack.c.b16 %v126, %v126
    %vm138 = vsmask.f32 256
    %vm139 = vsmask.f32 4368
    %vm140 = vmor %vm138, %vm139
    %v142 = vshrl.u32 %v134, 16
    %v144 = vrot.slane %v142, 7
    %v145 = vrot.slane %v144, 4
    %v147 = vshrl.u32 %v135, 16
    %v149 = vrot.slane %v147, 7
    %v150 = vshll.u32 %v135, 16
    %v152 = vor.u32 %v149, %v150
    %v153 = vsel %vm140, %v145, %v152
    %v155 = vshrl.u32 %v136, 16
    %v157 = vrot.slane %v155, 7
    %v158 = vrot.slane %v157, 4
    %v160 = vshrl.u32 %v137, 16
    %v162 = vrot.slane %v160, 7
    %v163 = vshll.u32 %v137, 16
    %v165 = vor.u32 %v162, %v163
    %v166 = vsel %vm140, %v158, %v165
    %v167 = vld [vmem:[#allocation5] sm:$0xf]
    %v168 = vld [vmem:[#allocation5 + $0x4] sm:$0xf]
    %v169 = vld [vmem:[#allocation5 + $0x8] sm:$0xf]
    %v170 = vld [vmem:[#allocation5 + $0xc] sm:$0xf]
    %v171 = vunpack.c.l.b16 %v153
    %v172 = vunpack.c.l.b16 %v166
    %v173 = vpack.c.b16 %v172, %v171
    %v178 = vunpack.c.l.b16 %v167
    %v179 = vunpack.c.l.b16 %v168
    %v180 = vunpack.c.l.b16 %v169
    %v181 = vunpack.c.l.b16 %v170
    %v182 = vpack.c.b16 %v179, %v178
    %v183 = vpack.c.b16 %v181, %v180
    %vm186 = vcmask 261120
    %v188 = vsel %vm186, %v173, 0
    %190 = vmatprep.subr.bf16.mxu0 0
    %191 = vmatpush1.bf16.msra.mxu0 %v182
    %192 = vmatprep.subr.bf16.mxu0 0
    %193 = vmatpush1.bf16.msra.mxu0 %v183
    %194 = vmatprep.subr.bf16.mxu0 0
    %195 = vmatpush1.bf16.msra.mxu0 0
    %196 = vmatprep.subr.bf16.mxu0 0
    %197 = vmatpush1.bf16.msra.mxu0 0
    %198 = vmatprep.subr.bf16.mxu0 0
    %199 = vmatpush1.bf16.msra.mxu0 0
    %200 = vmatprep.subr.bf16.mxu0 0
    %201 = vmatpush1.bf16.msra.mxu0 0
    %202 = vmatprep.subr.bf16.mxu0 0
    %203 = vmatpush1.bf16.msra.mxu0 0
    %204 = vmatprep.subr.bf16.mxu0 0
    %205 = vmatpush1.bf16.msra.mxu0 0
    %206 = vmatprep.subr.bf16.mxu0 0
    %207 = vmatpush1.bf16.msra.mxu0 0
    %208 = vmatprep.subr.bf16.mxu0 0
    %209 = vmatpush1.bf16.msra.mxu0 0
    %210 = vmatprep.subr.bf16.mxu0 0
    %211 = vmatpush1.bf16.msra.mxu0 0
    %212 = vmatprep.subr.bf16.mxu0 0
    %213 = vmatpush1.bf16.msra.mxu0 0
    %214 = vmatprep.subr.bf16.mxu0 0
    %215 = vmatpush1.bf16.msra.mxu0 0
    %216 = vmatprep.subr.bf16.mxu0 0
    %217 = vmatpush1.bf16.msra.mxu0 0
    %218 = vmatprep.subr.bf16.mxu0 0
    %219 = vmatpush1.bf16.msra.mxu0 0
    %220 = vmatprep.subr.bf16.mxu0 0
    %221 = vmatpush1.bf16.msra.mxu0 0
    %222 = vmatprep.mubr.bf16.mxu0 0
    %223 = vmatmul.mubr.bf16.gmra.mrb[0].mxu0 %v188
    %v224 = vpop.f32.mrb[0].mxu0
    %v225 = vadd.f32 0.0, %v224
    %v226 = vpop.f32.mrb[0].mxu0
    %v227 = vpop.f32.mrb[0].mxu0
    %v228 = vadd.f32 0.0, %v227
    %v229 = vpop.f32.mrb[0].mxu0
    %230 = vdwg.mxu0
    %v231 = vpack.c.b16 %v126, %v125
    %v236 = vunpack.c.l.b16 %v128
    %v237 = vunpack.c.l.b16 %v129
    %v238 = vunpack.c.l.b16 %v130
    %v239 = vunpack.c.l.b16 %v131
    %v240 = vpack.c.b16 %v237, %v236
    %v241 = vpack.c.b16 %v239, %v238
    %v245 = vsel %vm186, %v231, 0
    %247 = vmatprep.subr.bf16.mxu0 0
    %248 = vmatpush1.bf16.msra.mxu0 %v240
    %249 = vmatprep.subr.bf16.mxu0 0
    %250 = vmatpush1.bf16.msra.mxu0 %v241
    %251 = vmatprep.subr.bf16.mxu0 0
    %252 = vmatpush1.bf16.msra.mxu0 0
    %253 = vmatprep.subr.bf16.mxu0 0
    %254 = vmatpush1.bf16.msra.mxu0 0
    %255 = vmatprep.subr.bf16.mxu0 0
    %256 = vmatpush1.bf16.msra.mxu0 0
    %257 = vmatprep.subr.bf16.mxu0 0
    %258 = vmatpush1.bf16.msra.mxu0 0
    %259 = vmatprep.subr.bf16.mxu0 0
    %260 = vmatpush1.bf16.msra.mxu0 0
    %261 = vmatprep.subr.bf16.mxu0 0
    %262 = vmatpush1.bf16.msra.mxu0 0
    %263 = vmatprep.subr.bf16.mxu0 0
    %264 = vmatpush1.bf16.msra.mxu0 0
    %265 = vmatprep.subr.bf16.mxu0 0
    %266 = vmatpush1.bf16.msra.mxu0 0
    %267 = vmatprep.subr.bf16.mxu0 0
    %268 = vmatpush1.bf16.msra.mxu0 0
    %269 = vmatprep.subr.bf16.mxu0 0
    %270 = vmatpush1.bf16.msra.mxu0 0
    %271 = vmatprep.subr.bf16.mxu0 0
    %272 = vmatpush1.bf16.msra.mxu0 0
    %273 = vmatprep.subr.bf16.mxu0 0
    %274 = vmatpush1.bf16.msra.mxu0 0
    %275 = vmatprep.subr.bf16.mxu0 0
    %276 = vmatpush1.bf16.msra.mxu0 0
    %277 = vmatprep.subr.bf16.mxu0 0
    %278 = vmatpush1.bf16.msra.mxu0 0
    %279 = vmatprep.mubr.bf16.mxu0 0
    %280 = vmatmul.mubr.bf16.gmra.mrb[0].mxu0 %v245
    %v281 = vpop.f32.mrb[0].mxu0
    %v282 = vadd.f32 %v225, %v281
    %v283 = vpop.f32.mrb[0].mxu0
    %v284 = vpop.f32.mrb[0].mxu0
    %v285 = vadd.f32 %v228, %v284
    %v286 = vpop.f32.mrb[0].mxu0
    %287 = vdwg.mxu0
    %v288 = vld [vmem:[#allocation10] sm:$0x1]
    %v290 = vlaneseq
    %v291 = vshrl.u32 %v290, 7
    %v292 = vsub.s32 0, %v291
    %v293 = vrot.slane %v288, %v292
    %v295 = vadd.f32 %v282, %v293
    %v296 = vadd.f32 %v285, %v293
    %v297 = vld [vmem:[#allocation7] sm:$0xf]
    %v298 = vld [vmem:[#allocation7 + $0x4] sm:$0xf]
    %v299 = vld [vmem:[#allocation7 + $0x8] sm:$0xf]
    %v300 = vld [vmem:[#allocation7 + $0xc] sm:$0xf]
    %v301 = vld [vmem:[#allocation11] sm:$0x1]
    %v303 = vlaneseq
    %v304 = vshrl.u32 %v303, 7
    %v305 = vsub.s32 0, %v304
    %v306 = vrot.slane %v301, %v305
    %v312 = vunpack.c.l.b16 %v297
    %v313 = vunpack.c.l.b16 %v298
    %v314 = vunpack.c.l.b16 %v299
    %v315 = vunpack.c.l.b16 %v300
    %v316 = vpack.c.b16 %v313, %v312
    %v317 = vpack.c.b16 %v315, %v314
    %320 = vmatprep.subr.bf16.mxu0 0
    %321 = vmatpush1.bf16.msra.mxu0 %v316
    %322 = vmatprep.subr.bf16.mxu0 0
    %323 = vmatpush1.bf16.msra.mxu0 %v317
    %324 = vmatprep.subr.bf16.mxu0 0
    %325 = vmatpush1.bf16.msra.mxu0 0
    %326 = vmatprep.subr.bf16.mxu0 0
    %327 = vmatpush1.bf16.msra.mxu0 0
    %328 = vmatprep.subr.bf16.mxu0 0
    %329 = vmatpush1.bf16.msra.mxu0 0
    %330 = vmatprep.subr.bf16.mxu0 0
    %331 = vmatpush1.bf16.msra.mxu0 0
    %332 = vmatprep.subr.bf16.mxu0 0
    %333 = vmatpush1.bf16.msra.mxu0 0
    %334 = vmatprep.subr.bf16.mxu0 0
    %335 = vmatpush1.bf16.msra.mxu0 0
    %336 = vmatprep.subr.bf16.mxu0 0
    %337 = vmatpush1.bf16.msra.mxu0 0
    %338 = vmatprep.subr.bf16.mxu0 0
    %339 = vmatpush1.bf16.msra.mxu0 0
    %340 = vmatprep.subr.bf16.mxu0 0
    %341 = vmatpush1.bf16.msra.mxu0 0
    %342 = vmatprep.subr.bf16.mxu0 0
    %343 = vmatpush1.bf16.msra.mxu0 0
    %344 = vmatprep.subr.bf16.mxu0 0
    %345 = vmatpush1.bf16.msra.mxu0 0
    %346 = vmatprep.subr.bf16.mxu0 0
    %347 = vmatpush1.bf16.msra.mxu0 0
    %348 = vmatprep.subr.bf16.mxu0 0
    %349 = vmatpush1.bf16.msra.mxu0 0
    %350 = vmatprep.subr.bf16.mxu0 0
    %351 = vmatpush1.bf16.msra.mxu0 0
    %352 = vmatprep.mubr.bf16.mxu0 0
    %353 = vmatmul.mubr.bf16.gmra.mrb[0].mxu0 %v245
    %v354 = vpop.f32.mrb[0].mxu0
    %v355 = vadd.f32 %v306, %v354
    %v356 = vpop.f32.mrb[0].mxu0
    %v357 = vpop.f32.mrb[0].mxu0
    %v358 = vadd.f32 %v306, %v357
    %v359 = vpop.f32.mrb[0].mxu0
    %360 = vdwg.mxu0
    %v361 = vlaneseq
    %v362 = vshrl.u32 %v361, 7
    %v363 = vlaneseq
    %v364 = vand.u32 %v363, 127
    %vm365 = vcmp.ge.s32.totalorder %v362, %v364
    %v366 = vpack.c.bf16 %v295, %v295
    %v367 = vpack.c.bf16 %v296, %v296
    %v368 = vpack.c.bf16 %v355, %v355
    %v369 = vpack.c.bf16 %v358, %v358
    %371 = vrot.lane.b32.xlu0 %v366, 64
    %v372 = vpop.permute.xlu0 %371
    %v374 = vsel %vm186, %v366, 0
    %v377 = vsel %vm186, %v372, 0
    %379 = vmatprep.subr.bf16.mxu0 0
    %380 = vmatpush1.bf16.xpose.msra.mxu0 %v377
    %381 = vmatprep.subr.bf16.mxu0 0
    %382 = vmatpush1.bf16.xpose.msra.mxu0 0
    %383 = vmatprep.subr.bf16.mxu0 0
    %384 = vmatpush1.bf16.xpose.msra.mxu0 0
    %385 = vmatprep.subr.bf16.mxu0 0
    %386 = vmatpush1.bf16.xpose.msra.mxu0 0
    %387 = vmatprep.subr.bf16.mxu0 0
    %388 = vmatpush1.bf16.xpose.msra.mxu0 0
    %389 = vmatprep.subr.bf16.mxu0 0
    %390 = vmatpush1.bf16.xpose.msra.mxu0 0
    %391 = vmatprep.subr.bf16.mxu0 0
    %392 = vmatpush1.bf16.xpose.msra.mxu0 0
    %393 = vmatprep.subr.bf16.mxu0 0
    %394 = vmatpush1.bf16.xpose.msra.mxu0 0
    %395 = vmatprep.subr.bf16.mxu0 0
    %396 = vmatpush1.bf16.xpose.msra.mxu0 0
    %397 = vmatprep.subr.bf16.mxu0 0
    %398 = vmatpush1.bf16.xpose.msra.mxu0 0
    %399 = vmatprep.subr.bf16.mxu0 0
    %400 = vmatpush1.bf16.xpose.msra.mxu0 0
    %401 = vmatprep.subr.bf16.mxu0 0
    %402 = vmatpush1.bf16.xpose.msra.mxu0 0
    %403 = vmatprep.subr.bf16.mxu0 0
    %404 = vmatpush1.bf16.xpose.msra.mxu0 0
    %405 = vmatprep.subr.bf16.mxu0 0
    %406 = vmatpush1.bf16.xpose.msra.mxu0 0
    %407 = vmatprep.subr.bf16.mxu0 0
    %408 = vmatpush1.bf16.xpose.msra.mxu0 0
    %409 = vmatprep.subr.bf16.mxu0 0
    %410 = vmatpush1.bf16.xpose.msra.mxu0 0
    %411 = vmatprep.mubr.bf16.mxu0 0
    %412 = vmatmul.mubr.bf16.gmra.mrb[0].mxu0 %v374
    %v413 = vpop.f32.mrb[0].mxu0
    %v414 = vadd.f32 0.0, %v413
    %v415 = vpop.f32.mrb[0].mxu0
    %v416 = vpop.f32.mrb[0].mxu0
    %v417 = vpop.f32.mrb[0].mxu0
    %418 = vdwg.mxu0
    %420 = vrot.lane.b32.xlu0 %v367, 64
    %v421 = vpop.permute.xlu0 %420
    %v423 = vsel %vm186, %v367, 0
    %v426 = vsel %vm186, %v421, 0
    %428 = vmatprep.subr.bf16.mxu0 0
    %429 = vmatpush1.bf16.xpose.msra.mxu0 %v426
    %430 = vmatprep.subr.bf16.mxu0 0
    %431 = vmatpush1.bf16.xpose.msra.mxu0 0
    %432 = vmatprep.subr.bf16.mxu0 0
    %433 = vmatpush1.bf16.xpose.msra.mxu0 0
    %434 = vmatprep.subr.bf16.mxu0 0
    %435 = vmatpush1.bf16.xpose.msra.mxu0 0
    %436 = vmatprep.subr.bf16.mxu0 0
    %437 = vmatpush1.bf16.xpose.msra.mxu0 0
    %438 = vmatprep.subr.bf16.mxu0 0
    %439 = vmatpush1.bf16.xpose.msra.mxu0 0
    %440 = vmatprep.subr.bf16.mxu0 0
    %441 = vmatpush1.bf16.xpose.msra.mxu0 0
    %442 = vmatprep.subr.bf16.mxu0 0
    %443 = vmatpush1.bf16.xpose.msra.mxu0 0
    %444 = vmatprep.subr.bf16.mxu0 0
    %445 = vmatpush1.bf16.xpose.msra.mxu0 0
    %446 = vmatprep.subr.bf16.mxu0 0
    %447 = vmatpush1.bf16.xpose.msra.mxu0 0
    %448 = vmatprep.subr.bf16.mxu0 0
    %449 = vmatpush1.bf16.xpose.msra.mxu0 0
    %450 = vmatprep.subr.bf16.mxu0 0
    %451 = vmatpush1.bf16.xpose.msra.mxu0 0
    %452 = vmatprep.subr.bf16.mxu0 0
    %453 = vmatpush1.bf16.xpose.msra.mxu0 0
    %454 = vmatprep.subr.bf16.mxu0 0
    %455 = vmatpush1.bf16.xpose.msra.mxu0 0
    %456 = vmatprep.subr.bf16.mxu0 0
    %457 = vmatpush1.bf16.xpose.msra.mxu0 0
    %458 = vmatprep.subr.bf16.mxu0 0
    %459 = vmatpush1.bf16.xpose.msra.mxu0 0
    %460 = vmatprep.mubr.bf16.mxu0 0
    %461 = vmatmul.mubr.bf16.gmra.mrb[0].mxu0 %v423
    %v462 = vpop.f32.mrb[0].mxu0
    %v463 = vadd.f32 0.0, %v462
    %v464 = vpop.f32.mrb[0].mxu0
    %v465 = vpop.f32.mrb[0].mxu0
    %v466 = vpop.f32.mrb[0].mxu0
    %467 = vdwg.mxu0
    %v468 = vsel %vm365, 1, 0
    %vm469 = vcmp.eq.s32.totalorder %v468, 1
    %v470 = vsel %vm469, %v414, -1e+09
    %v471 = vsel %vm469, %v463, -1e+09
    %vm472 = vcmask 64512
    %v473 = vsel %vm472, %v470, -inf
    %474 = vmax.xlane.f32.xlu0 %v473
    %v475 = vpop.xlane.xlu0 %474
    %v476 = vsel %vm472, %v471, -inf
    %477 = vmax.xlane.f32.xlu0 %v476
    %v478 = vpop.xlane.xlu0 %477
    %v479 = vsub.f32 %v470, %v475
    %v480 = vsub.f32 %v471, %v478
    %v481 = vmul.f32 %v479, 1.442695
    %v482 = vpow.pop %v481
    %v483 = vmul.f32 %v480, 1.442695
    %v484 = vpow.pop %v483
    %v485 = vsel %vm472, %v482, 0.0
    %486 = vadd.xlane.f32.xlu0 %v485
    %v487 = vpop.xlane.xlu0 %486
    %v488 = vsel %vm472, %v484, 0.0
    %489 = vadd.xlane.f32.xlu0 %v488
    %v490 = vpop.xlane.xlu0 %489
    %v491 = vrcp.pop %v487
    %v492 = vrcp.pop %v490
    %v493 = vmul.f32 %v482, %v491
    %v494 = vmul.f32 %v484, %v492
    %v495 = vpack.c.bf16 %v493, %v493
    %v496 = vpack.c.bf16 %v494, %v494
    %v498 = vsel %vm472, %v495, 0
    %vm500 = vcmask 1043456
    %v502 = vsel %vm500, %v368, 0
    %504 = vmatprep.subr.bf16.mxu0 0
    %505 = vmatpush1.bf16.msra.mxu0 %v502
    %506 = vmatprep.subr.bf16.mxu0 0
    %507 = vmatpush1.bf16.msra.mxu0 0
    %508 = vmatprep.subr.bf16.mxu0 0
    %509 = vmatpush1.bf16.msra.mxu0 0
    %510 = vmatprep.subr.bf16.mxu0 0
    %511 = vmatpush1.bf16.msra.mxu0 0
    %512 = vmatprep.subr.bf16.mxu0 0
    %513 = vmatpush1.bf16.msra.mxu0 0
    %514 = vmatprep.subr.bf16.mxu0 0
    %515 = vmatpush1.bf16.msra.mxu0 0
    %516 = vmatprep.subr.bf16.mxu0 0
    %517 = vmatpush1.bf16.msra.mxu0 0
    %518 = vmatprep.subr.bf16.mxu0 0
    %519 = vmatpush1.bf16.msra.mxu0 0
    %520 = vmatprep.subr.bf16.mxu0 0
    %521 = vmatpush1.bf16.msra.mxu0 0
    %522 = vmatprep.subr.bf16.mxu0 0
    %523 = vmatpush1.bf16.msra.mxu0 0
    %524 = vmatprep.subr.bf16.mxu0 0
    %525 = vmatpush1.bf16.msra.mxu0 0
    %526 = vmatprep.subr.bf16.mxu0 0
    %527 = vmatpush1.bf16.msra.mxu0 0
    %528 = vmatprep.subr.bf16.mxu0 0
    %529 = vmatpush1.bf16.msra.mxu0 0
    %530 = vmatprep.subr.bf16.mxu0 0
    %531 = vmatpush1.bf16.msra.mxu0 0
    %532 = vmatprep.subr.bf16.mxu0 0
    %533 = vmatpush1.bf16.msra.mxu0 0
    %534 = vmatprep.subr.bf16.mxu0 0
    %535 = vmatpush1.bf16.msra.mxu0 0
    %536 = vmatprep.mubr.bf16.mxu0 0
    %537 = vmatmul.mubr.bf16.gmra.mrb[0].mxu0 %v498
    %v538 = vpop.f32.mrb[0].mxu0
    %v539 = vadd.f32 0.0, %v538
    %v540 = vpop.f32.mrb[0].mxu0
    %v541 = vpop.f32.mrb[0].mxu0
    %v542 = vpop.f32.mrb[0].mxu0
    %543 = vdwg.mxu0
    %v545 = vsel %vm472, %v496, 0
    %v548 = vsel %vm500, %v369, 0
    %550 = vmatprep.subr.bf16.mxu0 0
    %551 = vmatpush1.bf16.msra.mxu0 %v548
    %552 = vmatprep.subr.bf16.mxu0 0
    %553 = vmatpush1.bf16.msra.mxu0 0
    %554 = vmatprep.subr.bf16.mxu0 0
    %555 = vmatpush1.bf16.msra.mxu0 0
    %556 = vmatprep.subr.bf16.mxu0 0
    %557 = vmatpush1.bf16.msra.mxu0 0
    %558 = vmatprep.subr.bf16.mxu0 0
    %559 = vmatpush1.bf16.msra.mxu0 0
    %560 = vmatprep.subr.bf16.mxu0 0
    %561 = vmatpush1.bf16.msra.mxu0 0
    %562 = vmatprep.subr.bf16.mxu0 0
    %563 = vmatpush1.bf16.msra.mxu0 0
    %564 = vmatprep.subr.bf16.mxu0 0
    %565 = vmatpush1.bf16.msra.mxu0 0
    %566 = vmatprep.subr.bf16.mxu0 0
    %567 = vmatpush1.bf16.msra.mxu0 0
    %568 = vmatprep.subr.bf16.mxu0 0
    %569 = vmatpush1.bf16.msra.mxu0 0
    %570 = vmatprep.subr.bf16.mxu0 0
    %571 = vmatpush1.bf16.msra.mxu0 0
    %572 = vmatprep.subr.bf16.mxu0 0
    %573 = vmatpush1.bf16.msra.mxu0 0
    %574 = vmatprep.subr.bf16.mxu0 0
    %575 = vmatpush1.bf16.msra.mxu0 0
    %576 = vmatprep.subr.bf16.mxu0 0
    %577 = vmatpush1.bf16.msra.mxu0 0
    %578 = vmatprep.subr.bf16.mxu0 0
    %579 = vmatpush1.bf16.msra.mxu0 0
    %580 = vmatprep.subr.bf16.mxu0 0
    %581 = vmatpush1.bf16.msra.mxu0 0
    %582 = vmatprep.mubr.bf16.mxu0 0
    %583 = vmatmul.mubr.bf16.gmra.mrb[0].mxu0 %v545
    %v584 = vpop.f32.mrb[0].mxu0
    %v585 = vadd.f32 0.0, %v584
    %v586 = vpop.f32.mrb[0].mxu0
    %v587 = vpop.f32.mrb[0].mxu0
    %v588 = vpop.f32.mrb[0].mxu0
    %589 = vdwg.mxu0
    %590 = vrot.lane.b32.xlu0 %v366, 96
    %v591 = vpop.permute.xlu0 %590
    %592 = vrot.lane.b32.xlu0 %v366, 32
    %v593 = vpop.permute.xlu0 %592
    %v595 = vsel %vm186, %v591, 0
    %v598 = vsel %vm186, %v593, 0
    %600 = vmatprep.subr.bf16.mxu0 0
    %601 = vmatpush1.bf16.xpose.msra.mxu0 %v598
    %602 = vmatprep.subr.bf16.mxu0 0
    %603 = vmatpush1.bf16.xpose.msra.mxu0 0
    %604 = vmatprep.subr.bf16.mxu0 0
    %605 = vmatpush1.bf16.xpose.msra.mxu0 0
    %606 = vmatprep.subr.bf16.mxu0 0
    %607 = vmatpush1.bf16.xpose.msra.mxu0 0
    %608 = vmatprep.subr.bf16.mxu0 0
    %609 = vmatpush1.bf16.xpose.msra.mxu0 0
    %610 = vmatprep.subr.bf16.mxu0 0
    %611 = vmatpush1.bf16.xpose.msra.mxu0 0
    %612 = vmatprep.subr.bf16.mxu0 0
    %613 = vmatpush1.bf16.xpose.msra.mxu0 0
    %614 = vmatprep.subr.bf16.mxu0 0
    %615 = vmatpush1.bf16.xpose.msra.mxu0 0
    %616 = vmatprep.subr.bf16.mxu0 0
    %617 = vmatpush1.bf16.xpose.msra.mxu0 0
    %618 = vmatprep.subr.bf16.mxu0 0
    %619 = vmatpush1.bf16.xpose.msra.mxu0 0
    %620 = vmatprep.subr.bf16.mxu0 0
    %621 = vmatpush1.bf16.xpose.msra.mxu0 0
    %622 = vmatprep.subr.bf16.mxu0 0
    %623 = vmatpush1.bf16.xpose.msra.mxu0 0
    %624 = vmatprep.subr.bf16.mxu0 0
    %625 = vmatpush1.bf16.xpose.msra.mxu0 0
    %626 = vmatprep.subr.bf16.mxu0 0
    %627 = vmatpush1.bf16.xpose.msra.mxu0 0
    %628 = vmatprep.subr.bf16.mxu0 0
    %629 = vmatpush1.bf16.xpose.msra.mxu0 0
    %630 = vmatprep.subr.bf16.mxu0 0
    %631 = vmatpush1.bf16.xpose.msra.mxu0 0
    %632 = vmatprep.mubr.bf16.mxu0 0
    %633 = vmatmul.mubr.bf16.gmra.mrb[0].mxu0 %v595
    %v634 = vpop.f32.mrb[0].mxu0
    %v635 = vadd.f32 0.0, %v634
    %v636 = vpop.f32.mrb[0].mxu0
    %v637 = vpop.f32.mrb[0].mxu0
    %v638 = vpop.f32.mrb[0].mxu0
    %639 = vdwg.mxu0
    %640 = vrot.lane.b32.xlu0 %v367, 96
    %v641 = vpop.permute.xlu0 %640
    %642 = vrot.lane.b32.xlu0 %v367, 32
    %v643 = vpop.permute.xlu0 %642
    %v645 = vsel %vm186, %v641, 0
    %v648 = vsel %vm186, %v643, 0
    %650 = vmatprep.subr.bf16.mxu0 0
    %651 = vmatpush1.bf16.xpose.msra.mxu0 %v648
    %652 = vmatprep.subr.bf16.mxu0 0
    %653 = vmatpush1.bf16.xpose.msra.mxu0 0
    %654 = vmatprep.subr.bf16.mxu0 0
    %655 = vmatpush1.bf16.xpose.msra.mxu0 0
    %656 = vmatprep.subr.bf16.mxu0 0
    %657 = vmatpush1.bf16.xpose.msra.mxu0 0
    %658 = vmatprep.subr.bf16.mxu0 0
    %659 = vmatpush1.bf16.xpose.msra.mxu0 0
    %660 = vmatprep.subr.bf16.mxu0 0
    %661 = vmatpush1.bf16.xpose.msra.mxu0 0
    %662 = vmatprep.subr.bf16.mxu0 0
    %663 = vmatpush1.bf16.xpose.msra.mxu0 0
    %664 = vmatprep.subr.bf16.mxu0 0
    %665 = vmatpush1.bf16.xpose.msra.mxu0 0
    %666 = vmatprep.subr.bf16.mxu0 0
    %667 = vmatpush1.bf16.xpose.msra.mxu0 0
    %668 = vmatprep.subr.bf16.mxu0 0
    %669 = vmatpush1.bf16.xpose.msra.mxu0 0
    %670 = vmatprep.subr.bf16.mxu0 0
    %671 = vmatpush1.bf16.xpose.msra.mxu0 0
    %672 = vmatprep.subr.bf16.mxu0 0
    %673 = vmatpush1.bf16.xpose.msra.mxu0 0
    %674 = vmatprep.subr.bf16.mxu0 0
    %675 = vmatpush1.bf16.xpose.msra.mxu0 0
    %676 = vmatprep.subr.bf16.mxu0 0
    %677 = vmatpush1.bf16.xpose.msra.mxu0 0
    %678 = vmatprep.subr.bf16.mxu0 0
    %679 = vmatpush1.bf16.xpose.msra.mxu0 0
    %680 = vmatprep.subr.bf16.mxu0 0
    %681 = vmatpush1.bf16.xpose.msra.mxu0 0
    %682 = vmatprep.mubr.bf16.mxu0 0
    %683 = vmatmul.mubr.bf16.gmra.mrb[0].mxu0 %v645
    %v684 = vpop.f32.mrb[0].mxu0
    %v685 = vadd.f32 0.0, %v684
    %v686 = vpop.f32.mrb[0].mxu0
    %v687 = vpop.f32.mrb[0].mxu0
    %v688 = vpop.f32.mrb[0].mxu0
    %689 = vdwg.mxu0
    %v690 = vsel %vm469, %v635, -1e+09
    %v691 = vsel %vm469, %v685, -1e+09
    %v692 = vsel %vm472, %v690, -inf
    %693 = vmax.xlane.f32.xlu0 %v692
    %v694 = vpop.xlane.xlu0 %693
    %v695 = vsel %vm472, %v691, -inf
    %696 = vmax.xlane.f32.xlu0 %v695
    %v697 = vpop.xlane.xlu0 %696
    %v698 = vsub.f32 %v690, %v694
    %v699 = vsub.f32 %v691, %v697
    %v700 = vmul.f32 %v698, 1.442695
    %v701 = vpow.pop %v700
    %v702 = vmul.f32 %v699, 1.442695
    %v703 = vpow.pop %v702
    %v704 = vsel %vm472, %v701, 0.0
    %705 = vadd.xlane.f32.xlu0 %v704
    %v706 = vpop.xlane.xlu0 %705
    %v707 = vsel %vm472, %v703, 0.0
    %708 = vadd.xlane.f32.xlu0 %v707
    %v709 = vpop.xlane.xlu0 %708
    %v710 = vrcp.pop %v706
    %v711 = vrcp.pop %v709
    %v712 = vmul.f32 %v701, %v710
    %v713 = vmul.f32 %v703, %v711
    %v714 = vpack.c.bf16 %v712, %v712
    %v715 = vpack.c.bf16 %v713, %v713
    %717 = vrot.lane.b32.xlu0 %v368, 96
    %v718 = vpop.permute.xlu0 %717
    %v720 = vsel %vm472, %v714, 0
    %v723 = vsel %vm500, %v718, 0
    %725 = vmatprep.subr.bf16.mxu0 0
    %726 = vmatpush1.bf16.msra.mxu0 %v723
    %727 = vmatprep.subr.bf16.mxu0 0
    %728 = vmatpush1.bf16.msra.mxu0 0
    %729 = vmatprep.subr.bf16.mxu0 0
    %730 = vmatpush1.bf16.msra.mxu0 0
    %731 = vmatprep.subr.bf16.mxu0 0
    %732 = vmatpush1.bf16.msra.mxu0 0
    %733 = vmatprep.subr.bf16.mxu0 0
    %734 = vmatpush1.bf16.msra.mxu0 0
    %735 = vmatprep.subr.bf16.mxu0 0
    %736 = vmatpush1.bf16.msra.mxu0 0
    %737 = vmatprep.subr.bf16.mxu0 0
    %738 = vmatpush1.bf16.msra.mxu0 0
    %739 = vmatprep.subr.bf16.mxu0 0
    %740 = vmatpush1.bf16.msra.mxu0 0
    %741 = vmatprep.subr.bf16.mxu0 0
    %742 = vmatpush1.bf16.msra.mxu0 0
    %743 = vmatprep.subr.bf16.mxu0 0
    %744 = vmatpush1.bf16.msra.mxu0 0
    %745 = vmatprep.subr.bf16.mxu0 0
    %746 = vmatpush1.bf16.msra.mxu0 0
    %747 = vmatprep.subr.bf16.mxu0 0
    %748 = vmatpush1.bf16.msra.mxu0 0
    %749 = vmatprep.subr.bf16.mxu0 0
    %750 = vmatpush1.bf16.msra.mxu0 0
    %751 = vmatprep.subr.bf16.mxu0 0
    %752 = vmatpush1.bf16.msra.mxu0 0
    %753 = vmatprep.subr.bf16.mxu0 0
    %754 = vmatpush1.bf16.msra.mxu0 0
    %755 = vmatprep.subr.bf16.mxu0 0
    %756 = vmatpush1.bf16.msra.mxu0 0
    %757 = vmatprep.mubr.bf16.mxu0 0
    %758 = vmatmul.mubr.bf16.gmra.mrb[0].mxu0 %v720
    %v759 = vpop.f32.mrb[0].mxu0
    %v760 = vadd.f32 0.0, %v759
    %v761 = vpop.f32.mrb[0].mxu0
    %v762 = vpop.f32.mrb[0].mxu0
    %v763 = vpop.f32.mrb[0].mxu0
    %764 = vdwg.mxu0
    %766 = vrot.lane.b32.xlu0 %v369, 96
    %v767 = vpop.permute.xlu0 %766
    %v769 = vsel %vm472, %v715, 0
    %v772 = vsel %vm500, %v767, 0
    %774 = vmatprep.subr.bf16.mxu0 0
    %775 = vmatpush1.bf16.msra.mxu0 %v772
    %776 = vmatprep.subr.bf16.mxu0 0
    %777 = vmatpush1.bf16.msra.mxu0 0
    %778 = vmatprep.subr.bf16.mxu0 0
    %779 = vmatpush1.bf16.msra.mxu0 0
    %780 = vmatprep.subr.bf16.mxu0 0
    %781 = vmatpush1.bf16.msra.mxu0 0
    %782 = vmatprep.subr.bf16.mxu0 0
    %783 = vmatpush1.bf16.msra.mxu0 0
    %784 = vmatprep.subr.bf16.mxu0 0
    %785 = vmatpush1.bf16.msra.mxu0 0
    %786 = vmatprep.subr.bf16.mxu0 0
    %787 = vmatpush1.bf16.msra.mxu0 0
    %788 = vmatprep.subr.bf16.mxu0 0
    %789 = vmatpush1.bf16.msra.mxu0 0
    %790 = vmatprep.subr.bf16.mxu0 0
    %791 = vmatpush1.bf16.msra.mxu0 0
    %792 = vmatprep.subr.bf16.mxu0 0
    %793 = vmatpush1.bf16.msra.mxu0 0
    %794 = vmatprep.subr.bf16.mxu0 0
    %795 = vmatpush1.bf16.msra.mxu0 0
    %796 = vmatprep.subr.bf16.mxu0 0
    %797 = vmatpush1.bf16.msra.mxu0 0
    %798 = vmatprep.subr.bf16.mxu0 0
    %799 = vmatpush1.bf16.msra.mxu0 0
    %800 = vmatprep.subr.bf16.mxu0 0
    %801 = vmatpush1.bf16.msra.mxu0 0
    %802 = vmatprep.subr.bf16.mxu0 0
    %803 = vmatpush1.bf16.msra.mxu0 0
    %804 = vmatprep.subr.bf16.mxu0 0
    %805 = vmatpush1.bf16.msra.mxu0 0
    %806 = vmatprep.mubr.bf16.mxu0 0
    %807 = vmatmul.mubr.bf16.gmra.mrb[0].mxu0 %v769
    %v808 = vpop.f32.mrb[0].mxu0
    %v809 = vadd.f32 0.0, %v808
    %v810 = vpop.f32.mrb[0].mxu0
    %v811 = vpop.f32.mrb[0].mxu0
    %v812 = vpop.f32.mrb[0].mxu0
    %813 = vdwg.mxu0
    %816 = vrot.lane.b32.xlu0 %v760, 32
    %v817 = vpop.permute.xlu0 %816
    %818 = vrot.lane.b32.xlu0 %v809, 32
    %v819 = vpop.permute.xlu0 %818
    %v822 = vsel %vm186, %v539, %v817
    %v823 = vsel %vm186, %v585, %v819
    %v824 = vld [vmem:[#allocation13] sm:$0x7]
    %v825 = vpack.c.bf16 %v823, %v822
    %v826 = vld [vmem:[#allocation8] sm:$0xf]
    %v827 = vld [vmem:[#allocation8 + $0x4] sm:$0xf]
    %v828 = vld [vmem:[#allocation8 + $0x8] sm:$0xf]
    %v829 = vld [vmem:[#allocation8 + $0xc] sm:$0xf]
    %v830 = vld [vmem:[#allocation8 + $0x10] sm:$0xf]
    %v831 = vld [vmem:[#allocation8 + $0x14] sm:$0xf]
    %v832 = vld [vmem:[#allocation8 + $0x18] sm:$0xf]
    %v833 = vld [vmem:[#allocation8 + $0x1c] sm:$0xf]
    %v842 = vunpack.c.l.b16 %v826
    %v843 = vunpack.c.l.b16 %v827
    %v844 = vunpack.c.l.b16 %v828
    %v845 = vunpack.c.l.b16 %v829
    %v846 = vunpack.c.l.b16 %v830
    %v847 = vunpack.c.l.b16 %v831
    %v848 = vunpack.c.l.b16 %v832
    %v849 = vunpack.c.l.b16 %v833
    %v850 = vpack.c.b16 %v843, %v842
    %v851 = vpack.c.b16 %v845, %v844
    %v852 = vpack.c.b16 %v847, %v846
    %v853 = vpack.c.b16 %v849, %v848
    %vm858 = vcmask 523264
    %v860 = vsel %vm858, %v825, 0
    %862 = vmatprep.subr.bf16.mxu0 0
    %863 = vmatpush1.bf16.msra.mxu0 %v850
    %864 = vmatprep.subr.bf16.mxu0 0
    %865 = vmatpush1.bf16.msra.mxu0 %v851
    %866 = vmatprep.subr.bf16.mxu0 0
    %867 = vmatpush1.bf16.msra.mxu0 %v852
    %868 = vmatprep.subr.bf16.mxu0 0
    %869 = vmatpush1.bf16.msra.mxu0 %v853
    %870 = vmatprep.subr.bf16.mxu0 0
    %871 = vmatpush1.bf16.msra.mxu0 0
    %872 = vmatprep.subr.bf16.mxu0 0
    %873 = vmatpush1.bf16.msra.mxu0 0
    %874 = vmatprep.subr.bf16.mxu0 0
    %875 = vmatpush1.bf16.msra.mxu0 0
    %876 = vmatprep.subr.bf16.mxu0 0
    %877 = vmatpush1.bf16.msra.mxu0 0
    %878 = vmatprep.subr.bf16.mxu0 0
    %879 = vmatpush1.bf16.msra.mxu0 0
    %880 = vmatprep.subr.bf16.mxu0 0
    %881 = vmatpush1.bf16.msra.mxu0 0
    %882 = vmatprep.subr.bf16.mxu0 0
    %883 = vmatpush1.bf16.msra.mxu0 0
    %884 = vmatprep.subr.bf16.mxu0 0
    %885 = vmatpush1.bf16.msra.mxu0 0
    %886 = vmatprep.subr.bf16.mxu0 0
    %887 = vmatpush1.bf16.msra.mxu0 0
    %888 = vmatprep.subr.bf16.mxu0 0
    %889 = vmatpush1.bf16.msra.mxu0 0
    %890 = vmatprep.subr.bf16.mxu0 0
    %891 = vmatpush1.bf16.msra.mxu0 0
    %892 = vmatprep.subr.bf16.mxu0 0
    %893 = vmatpush1.bf16.msra.mxu0 0
    %894 = vmatprep.mubr.bf16.mxu0 0
    %895 = vmatmul.mubr.bf16.gmra.mrb[0].mxu0 %v860
    %v896 = vpop.f32.mrb[0].mxu0
    %v897 = vadd.f32 0.0, %v896
    %v898 = vpop.f32.mrb[0].mxu0
    %v899 = vpop.f32.mrb[0].mxu0
    %v900 = vadd.f32 0.0, %v899
    %v901 = vpop.f32.mrb[0].mxu0
    %902 = vdwg.mxu0
    %v903 = vadd.f32 %v118, %v897
    %v904 = vadd.f32 %v120, %v900
    %v905 = vlaneseq
    %v906 = vshrl.u32 %v905, 7
    %v907 = vsub.s32 0, %v906
    %v908 = vrot.slane %v824, %v907
    %v909 = vadd.f32 %v903, %v908
    %v910 = vadd.f32 %v904, %v908
    %v911 = vsel %vm186, %v909, 0.0
    %912 = vadd.xlane.f32.xlu0 %v911
    %v913 = vpop.xlane.xlu0 %912
    %v914 = vsel %vm186, %v910, 0.0
    %915 = vadd.xlane.f32.xlu0 %v914
    %v916 = vpop.xlane.xlu0 %915
    %v917 = vrcp.pop 32.0
    %v918 = vmul.f32 %v913, %v917
    %v919 = vmul.f32 %v916, %v917
    %v920 = vsub.f32 %v909, %v918
    %v921 = vsub.f32 %v910, %v919
    %v922 = vmul.f32 %v920, %v920
    %v923 = vmul.f32 %v921, %v921
    %v924 = vsel %vm186, %v922, 0.0
    %925 = vadd.xlane.f32.xlu0 %v924
    %v926 = vpop.xlane.xlu0 %925
    %v927 = vsel %vm186, %v923, 0.0
    %928 = vadd.xlane.f32.xlu0 %v927
    %v929 = vpop.xlane.xlu0 %928
    %v930 = vmul.f32 %v926, %v917
    %v931 = vmul.f32 %v929, %v917
    %v932 = vadd.f32 %v930, 1e-05
    %v933 = vadd.f32 %v931, 1e-05
    %v934 = vrsqrt.pop %v932
    %v935 = vrsqrt.pop %v933
    %v936 = vmul.f32 %v920, %v934
    %v937 = vmul.f32 %v921, %v935
    %v938 = vlaneseq
    %v939 = vshrl.u32 %v938, 7
    %v940 = vsub.s32 1, %v939
    %v941 = vrot.slane %v824, %v940
    %v942 = vmul.f32 %v941, %v936
    %v943 = vmul.f32 %v941, %v937
    %v944 = vlaneseq
    %v945 = vshrl.u32 %v944, 7
    %v946 = vsub.s32 2, %v945
    %v947 = vrot.slane %v824, %v946
    %v948 = vadd.f32 %v942, %v947
    %v949 = vadd.f32 %v943, %v947
    %950 = vst.msk [vmem:[#allocation14] sm:$0xff] %vm186, %v948
    %951 = vst.msk [vmem:[#allocation14 + $0x8] sm:$0xff] %vm186, %v949
    // Predicated region
    $region58: #{block_forward.1} parent=1 // pred_check
      _
    $region59: #{block_forward.1} parent=1 // pred_check_branch
      %953 = sbr.rel (0) target = $region61
    $region60: #{block_forward.1} parent=1 // pred_region
      %s955 = ssub.s32 256, 256
      %956 = vsyncadd [#allocation4], %s955
      %s957 = sshll.u32 [#allocation14], 4
      %s958 = int_to_ptr.vmem [resolvable:$true] %s957
      %963 = dma.vmem_to_hbm [thread:$0]  %s958, 256, %s7, [#allocation4], 128, 128, 8
    $region61: #{block_forward.1} parent=1 // pred_fallthru
      _
    // Predicated region
    $region62: #{block_forward.1} parent=1 // pred_check
      _
    $region63: #{block_forward.1} parent=1 // pred_check_branch
      %965 = sbr.rel (0) target = $region65
    $region64: #{block_forward.1} parent=1 // pred_region
      %966 = dma.done [#allocation4], 256
    $region65: #{block_forward.1} parent=1 // pred_fallthru
      _
    %967 = vsyncpa [#allocation3], 1
    %968 = vsyncpa [#allocation6], 1
    %969 = vsyncpa [#allocation9], 1
    %970 = vsyncpa [#allocation12], 1
    %971 = vsyncpa [#allocation4], 1

</llo_original>
